<compile_context>
chip_gen: v7x
topology: tpu7x:2x2x1
jax: 0.10.0
libtpu: 0.0.40
codegen_flags: <defaults>
</compile_context>

<pallas_src>
import functools

import jax
import jax.numpy as jnp
from jax import lax
from jax.experimental import pallas as pl
from jax.experimental.pallas import tpu as pltpu

EPS = 1e-3  # BatchNorm2d eps=0.001


def fused_kernel(x_ref, s_ref, w_ref, gamma_ref, beta_ref, res_ref, o_ref,
                 *, n_valid):
    # x_ref:     (Cin, P_pad)  flattened activation (lanes >= n_valid are padding)
    # s_ref:     (1, Cin)      per-input-channel scale (x132)
    # w_ref:     (Cout, Cin)   1x1 conv weight
    # gamma_ref: (Cout, 1)     BN weight
    # beta_ref:  (Cout, 1)     BN bias
    # res_ref:   (Cout, P_pad) residual (x121)
    # o_ref:     (Cout, P_pad) output block over a (Cout, P) array
    cout, p_pad = o_ref.shape

    # Fold the per-channel scale into the (small) weight instead of scaling
    # the full activation:  (Cout, Cin) * (1, Cin).
    w_scaled = w_ref[...] * s_ref[...]

    # 1x1 conv == channel matmul in native NCHW layout (MXU).
    y = jnp.dot(w_scaled, x_ref[...],
                preferred_element_type=jnp.float32)          # (Cout, P_pad)

    # Mask padded lanes out of the batch statistics (their contents are
    # undefined VMEM; the corresponding output lanes are discarded on store).
    lane = lax.broadcasted_iota(jnp.int32, (cout, p_pad), 1)
    y_m = jnp.where(lane < n_valid, y, 0.0)

    # One-pass training-mode BN statistics (biased variance, as PyTorch uses
    # for normalization).
    inv_n = 1.0 / n_valid
    mean = jnp.sum(y_m, axis=-1, keepdims=True) * inv_n        # (Cout, 1)
    ey2 = jnp.sum(y_m * y_m, axis=-1, keepdims=True) * inv_n   # (Cout, 1)
    var = ey2 - mean * mean
    inv_std = lax.rsqrt(var + EPS)

    # Pre-fold the affine:  o = y * a + b + res   (one FMA + add per element).
    a = gamma_ref[...] * inv_std                               # (Cout, 1)
    b = beta_ref[...] - mean * a                               # (Cout, 1)
    o_ref[...] = y * a + b + res_ref[...]


def fused_mul_conv_bn_add(x132, x127, x121, conv_w, bn_gamma, bn_beta):
    """Inputs in PyTorch NCHW / (Cout, Cin, 1, 1) conventions. Batch must be 1."""
    N, Cin, H, W = x127.shape
    Cout = conv_w.shape[0]
    assert N == 1, "kernel specialised to batch size 1 (as in the module spec)"
    P = H * W
    P_pad = ((P + 127) // 128) * 128  # lane-dense block width (196 -> 256)

    # Native-layout reshapes only — no transposes, all metadata-free.
    x_mat = x127.reshape(Cin, P)
    res_mat = x121.reshape(Cout, P)
    s_row = x132.reshape(1, Cin)
    w_mat = conv_w.reshape(Cout, Cin)
    gamma = bn_gamma.reshape(Cout, 1)
    beta = bn_beta.reshape(Cout, 1)

    flops = 2 * P * Cin * Cout
    bytes_accessed = 4 * (Cin * P + Cout * Cin + Cin + 2 * Cout + 2 * Cout * P)

    out_mat = pl.pallas_call(
        functools.partial(fused_kernel, n_valid=P),
        out_shape=jax.ShapeDtypeStruct((Cout, P), jnp.float32),
        grid=(1,),
        in_specs=[
            pl.BlockSpec((Cin, P_pad), lambda i: (0, 0)),   # x
            pl.BlockSpec((1, Cin), lambda i: (0, 0)),       # scale
            pl.BlockSpec((Cout, Cin), lambda i: (0, 0)),    # conv weight
            pl.BlockSpec((Cout, 1), lambda i: (0, 0)),      # gamma
            pl.BlockSpec((Cout, 1), lambda i: (0, 0)),      # beta
            pl.BlockSpec((Cout, P_pad), lambda i: (0, 0)),  # residual
        ],
        out_specs=pl.BlockSpec((Cout, P_pad), lambda i: (0, 0)),
        compiler_params=pltpu.CompilerParams(
            dimension_semantics=("arbitrary",)),
        cost_estimate=pl.CostEstimate(
            flops=flops, transcendentals=0, bytes_accessed=bytes_accessed),
    )(x_mat, s_row, w_mat, gamma, beta, res_mat)

    # (Cout, P) -> (1, Cout, H, W): pure reshape, no transpose needed.
    return out_mat.reshape(N, Cout, H, W)


def _reference(x132, x127, x121, conv_w, bn_gamma, bn_beta):
    """Pure-JAX reference of the PyTorch forward (training-mode BN)."""
    xs = x127 * x132                                             # mul
    y = jnp.einsum('nchw,oc->nohw', xs, conv_w.reshape(conv_w.shape[0], -1))
    mean = jnp.mean(y, axis=(0, 2, 3), keepdims=True)
    var = jnp.mean((y - mean) ** 2, axis=(0, 2, 3), keepdims=True)
    y = (y - mean) * lax.rsqrt(var + EPS)
    y = y * bn_gamma.reshape(1, -1, 1, 1) + bn_beta.reshape(1, -1, 1, 1)
    return y + x121                                              # add


if __name__ == "__main__":
    key = jax.random.PRNGKey(0)
    k1, k2, k3, k4 = jax.random.split(key, 4)

    # Shapes exactly as the PyTorch module's forward implies (already small).
    x121 = jax.random.normal(k1, (1, 112, 14, 14), dtype=jnp.float32)
    x127 = jax.random.normal(k2, (1, 672, 14, 14), dtype=jnp.float32)
    x132 = jax.random.normal(k3, (1, 672, 1, 1), dtype=jnp.float32)

    # Deterministic parameter init (synthetic, not a checkpoint load).
    conv_w = jax.random.normal(k4, (112, 672, 1, 1), dtype=jnp.float32) * 0.02
    bn_gamma = jnp.ones((112,), dtype=jnp.float32)   # BatchNorm2d default weight
    bn_beta = jnp.zeros((112,), dtype=jnp.float32)   # BatchNorm2d default bias

    out = fused_mul_conv_bn_add(x132, x127, x121, conv_w, bn_gamma, bn_beta)
    jax.block_until_ready(out)
    assert out.shape == (1, 112, 14, 14)

    ref = _reference(x132, x127, x121, conv_w, bn_gamma, bn_beta)
    max_err = float(jnp.max(jnp.abs(out - ref)))
    assert max_err < 5e-2, f"max abs error vs reference: {max_err}"

    print("KERNEL_OK")
</pallas_src>

<mosaic_0001>
module attributes {stable_mosaic.version = 11 : i64} {
  func.func @fused_kernel(%arg0: i32, %arg1: memref<672x256xf32, #tpu.memory_space<vmem>>, %arg2: memref<1x672xf32, #tpu.memory_space<vmem>>, %arg3: memref<112x672xf32, #tpu.memory_space<vmem>>, %arg4: memref<112x1xf32, #tpu.memory_space<vmem>>, %arg5: memref<112x1xf32, #tpu.memory_space<vmem>>, %arg6: memref<112x256xf32, #tpu.memory_space<vmem>>, %arg7: memref<112x256xf32, #tpu.memory_space<vmem>>) attributes {dimension_semantics = [#tpu.dimension_semantics<arbitrary>], iteration_bounds = array<i64: 1>, scalar_prefetch = 0 : i64, scratch_operands = 0 : i64, tpu.core_type = #tpu.core_type<tc>, window_params = [{transform_indices = @transform_0, window_bounds = array<i64: 672, 256>}, {pipeline_mode = #tpu.pipeline_mode<synchronous>, transform_indices = @transform_1, window_bounds = array<i64: 1, 672>}, {pipeline_mode = #tpu.pipeline_mode<synchronous>, transform_indices = @transform_2, window_bounds = array<i64: 112, 672>}, {pipeline_mode = #tpu.pipeline_mode<synchronous>, transform_indices = @transform_3, window_bounds = array<i64: 112, 1>}, {pipeline_mode = #tpu.pipeline_mode<synchronous>, transform_indices = @transform_4, window_bounds = array<i64: 112, 1>}, {transform_indices = @transform_5, window_bounds = array<i64: 112, 256>}, {transform_indices = @transform_6, window_bounds = array<i64: 112, 256>}]} {
    %c0 = arith.constant 0 : index
    %c0_0 = arith.constant 0 : index
    %0 = vector.load %arg3[%c0, %c0_0] : memref<112x672xf32, #tpu.memory_space<vmem>>, vector<112x672xf32>
    %c0_1 = arith.constant 0 : index
    %c0_2 = arith.constant 0 : index
    %1 = vector.load %arg2[%c0_1, %c0_2] : memref<1x672xf32, #tpu.memory_space<vmem>>, vector<1x672xf32>
    %2 = vector.broadcast %1 : vector<1x672xf32> to vector<112x672xf32>
    %3 = arith.mulf %0, %2 : vector<112x672xf32>
    %c0_3 = arith.constant 0 : index
    %c0_4 = arith.constant 0 : index
    %4 = vector.load %arg1[%c0_3, %c0_4] : memref<672x256xf32, #tpu.memory_space<vmem>>, vector<672x256xf32>
    %cst = arith.constant dense<0.000000e+00> : vector<112x256xf32>
    %5 = tpu.matmul %3, %4, %cst {dimension_numbers = #tpu.dot_dimension_numbers<[1], [0], [0], [1], [0, 0, 1, 1], [], []>} : vector<112x672xf32>, vector<672x256xf32>, vector<112x256xf32> -> vector<112x256xf32>
    %6 = tpu.iota {dimensions = array<i32: 1>} : vector<112x256xi32>
    %c196_i32 = arith.constant 196 : i32
    %7 = vector.broadcast %c196_i32 : i32 to vector<112x256xi32>
    %8 = arith.cmpi slt, %6, %7 : vector<112x256xi32>
    %cst_5 = arith.constant 0.000000e+00 : f32
    %9 = vector.broadcast %cst_5 : f32 to vector<112x256xf32>
    %10 = arith.select %8, %5, %9 : vector<112x256xi1>, vector<112x256xf32>
    %cst_6 = arith.constant dense<0.000000e+00> : vector<112xf32>
    %11 = vector.multi_reduction <add>, %10, %cst_6 [1] : vector<112x256xf32> to vector<112xf32>
    %12 = vector.shape_cast %11 : vector<112xf32> to vector<112x1xf32>
    %cst_7 = arith.constant 0.00510204071 : f32
    %13 = vector.broadcast %cst_7 : f32 to vector<112x1xf32>
    %14 = arith.mulf %12, %13 : vector<112x1xf32>
    %15 = arith.mulf %10, %10 : vector<112x256xf32>
    %cst_8 = arith.constant dense<0.000000e+00> : vector<112xf32>
    %16 = vector.multi_reduction <add>, %15, %cst_8 [1] : vector<112x256xf32> to vector<112xf32>
    %17 = vector.shape_cast %16 : vector<112xf32> to vector<112x1xf32>
    %cst_9 = arith.constant 0.00510204071 : f32
    %18 = vector.broadcast %cst_9 : f32 to vector<112x1xf32>
    %19 = arith.mulf %17, %18 : vector<112x1xf32>
    %20 = arith.mulf %14, %14 : vector<112x1xf32>
    %21 = arith.subf %19, %20 : vector<112x1xf32>
    %cst_10 = arith.constant 1.000000e-03 : f32
    %22 = vector.broadcast %cst_10 : f32 to vector<112x1xf32>
    %23 = arith.addf %21, %22 : vector<112x1xf32>
    %24 = math.rsqrt %23 : vector<112x1xf32>
    %c0_11 = arith.constant 0 : index
    %c0_12 = arith.constant 0 : index
    %25 = vector.load %arg4[%c0_11, %c0_12] : memref<112x1xf32, #tpu.memory_space<vmem>>, vector<112x1xf32>
    %26 = arith.mulf %25, %24 : vector<112x1xf32>
    %c0_13 = arith.constant 0 : index
    %c0_14 = arith.constant 0 : index
    %27 = vector.load %arg5[%c0_13, %c0_14] : memref<112x1xf32, #tpu.memory_space<vmem>>, vector<112x1xf32>
    %28 = arith.mulf %14, %26 : vector<112x1xf32>
    %29 = arith.subf %27, %28 : vector<112x1xf32>
    %30 = vector.broadcast %26 : vector<112x1xf32> to vector<112x256xf32>
    %31 = arith.mulf %5, %30 : vector<112x256xf32>
    %32 = vector.broadcast %29 : vector<112x1xf32> to vector<112x256xf32>
    %33 = arith.addf %31, %32 : vector<112x256xf32>
    %c0_15 = arith.constant 0 : index
    %c0_16 = arith.constant 0 : index
    %34 = vector.load %arg6[%c0_15, %c0_16] : memref<112x256xf32, #tpu.memory_space<vmem>>, vector<112x256xf32>
    %35 = arith.addf %33, %34 : vector<112x256xf32>
    %c0_17 = arith.constant 0 : index
    %c0_18 = arith.constant 0 : index
    %36 = vector.load %arg7[%c0_17, %c0_18] : memref<112x256xf32, #tpu.memory_space<vmem>>, vector<112x256xf32>
    tpu.vector_store %arg7[%c0_17, %c0_18], %35 {strides = array<i32>} : memref<112x256xf32, #tpu.memory_space<vmem>>, vector<112x256xf32>,
    return
  }
  func.func @transform_0(%arg0: i32) -> (i32, i32) {
    %c0_i32 = arith.constant 0 : i32
    %c0_i32_0 = arith.constant 0 : i32
    %c0_i32_1 = arith.constant 0 : i32
    return %c0_i32, %c0_i32_0 : i32, i32
  }
  func.func @transform_1(%arg0: i32) -> (i32, i32) {
    %c0_i32 = arith.constant 0 : i32
    %c0_i32_0 = arith.constant 0 : i32
    %c0_i32_1 = arith.constant 0 : i32
    return %c0_i32, %c0_i32_0 : i32, i32
  }
  func.func @transform_2(%arg0: i32) -> (i32, i32) {
    %c0_i32 = arith.constant 0 : i32
    %c0_i32_0 = arith.constant 0 : i32
    %c0_i32_1 = arith.constant 0 : i32
    return %c0_i32, %c0_i32_0 : i32, i32
  }
  func.func @transform_3(%arg0: i32) -> (i32, i32) {
    %c0_i32 = arith.constant 0 : i32
    %c0_i32_0 = arith.constant 0 : i32
    %c0_i32_1 = arith.constant 0 : i32
    return %c0_i32, %c0_i32_0 : i32, i32
  }
  func.func @transform_4(%arg0: i32) -> (i32, i32) {
    %c0_i32 = arith.constant 0 : i32
    %c0_i32_0 = arith.constant 0 : i32
    %c0_i32_1 = arith.constant 0 : i32
    return %c0_i32, %c0_i32_0 : i32, i32
  }
  func.func @transform_5(%arg0: i32) -> (i32, i32) {
    %c0_i32 = arith.constant 0 : i32
    %c0_i32_0 = arith.constant 0 : i32
    %c0_i32_1 = arith.constant 0 : i32
    return %c0_i32, %c0_i32_0 : i32, i32
  }
  func.func @transform_6(%arg0: i32) -> (i32, i32) {
    %c0_i32 = arith.constant 0 : i32
    %c0_i32_0 = arith.constant 0 : i32
    %c0_i32_1 = arith.constant 0 : i32
    return %c0_i32, %c0_i32_0 : i32, i32
  }
}

</mosaic_0001>

<llo_original>
// kernel: tpu_custom_call.1
$region0: #{tpu_custom_call.1}
  #allocation0 [shape = 'u32[]', space=smem, size = 0x4, offset = 0x4, fixed_abs, tag = 'smem constant byte address 0x4 - core index']
  #allocation1 [shape = 'u32[144,128]{1,0:T(1,128)}', space=vmem, size = 0x12000, scoped, tag = 'internal scratch']
  %s0 = inlined_call_operand.vmem [shape: f32[672,196], index: 0, kind: input, shape index: {}]
  %s1 = inlined_call_operand.vmem [shape: f32[1,672], index: 1, kind: input, shape index: {}]
  %s2 = inlined_call_operand.vmem [shape: f32[112,672], index: 2, kind: input, shape index: {}]
  %s3 = inlined_call_operand.vmem [shape: f32[112,1], index: 3, kind: input, shape index: {}]
  %s4 = inlined_call_operand.vmem [shape: f32[112,1], index: 4, kind: input, shape index: {}]
  %s5 = inlined_call_operand.vmem [shape: f32[112,196], index: 5, kind: input, shape index: {}]
  %s6 = inlined_call_operand.vmem [shape: f32[112,196], index: 6, kind: output, shape index: {}]
  %s7 = sld [smem:[#allocation0]]
  $region34: #{tpu_custom_call.1} parent=0
    _
  %s9 = ssub.s32 1, %s7
  %s10 = scalar_select 0, %s9, %s7
  // Predicated region
  $region2: #{tpu_custom_call.1} parent=0 // pred_check
    _
  $region3: #{tpu_custom_call.1} parent=0 // pred_check_branch
    %12 = sbr.rel (0) target = $region5
  $region4: #{tpu_custom_call.1} parent=0 // pred_region
    _
  $region5: #{tpu_custom_call.1} parent=0 // pred_fallthru
    _
  // Predicated region
  $region6: #{tpu_custom_call.1} parent=0 // pred_check
    _
  $region7: #{tpu_custom_call.1} parent=0 // pred_check_branch
    %14 = sbr.rel (0) target = $region9
  $region8: #{tpu_custom_call.1} parent=0 // pred_region
    _
  $region9: #{tpu_custom_call.1} parent=0 // pred_fallthru
    _
  // Predicated region
  $region10: #{tpu_custom_call.1} parent=0 // pred_check
    _
  $region11: #{tpu_custom_call.1} parent=0 // pred_check_branch
    %16 = sbr.rel (0) target = $region13
  $region12: #{tpu_custom_call.1} parent=0 // pred_region
    _
  $region13: #{tpu_custom_call.1} parent=0 // pred_fallthru
    _
  // Predicated region
  $region14: #{tpu_custom_call.1} parent=0 // pred_check
    _
  $region15: #{tpu_custom_call.1} parent=0 // pred_check_branch
    %18 = sbr.rel (0) target = $region17
  $region16: #{tpu_custom_call.1} parent=0 // pred_region
    _
  $region17: #{tpu_custom_call.1} parent=0 // pred_fallthru
    _
  // Predicated region
  $region18: #{tpu_custom_call.1} parent=0 // pred_check
    _
  $region19: #{tpu_custom_call.1} parent=0 // pred_check_branch
    %20 = sbr.rel (0) target = $region21
  $region20: #{tpu_custom_call.1} parent=0 // pred_region
    _
  $region21: #{tpu_custom_call.1} parent=0 // pred_fallthru
    _
  // Predicated region
  $region22: #{tpu_custom_call.1} parent=0 // pred_check
    _
  $region23: #{tpu_custom_call.1} parent=0 // pred_check_branch
    %22 = sbr.rel (0) target = $region25
  $region24: #{tpu_custom_call.1} parent=0 // pred_region
    _
  $region25: #{tpu_custom_call.1} parent=0 // pred_fallthru
    _
  %v23 = vld [vmem:[%s2] sm:$0xff]
  %v24 = vld [vmem:[%s2 + $0x8] sm:$0xff]
  %v25 = vld [vmem:[%s2 + $0x10] sm:$0xff]
  %v26 = vld [vmem:[%s2 + $0x18] sm:$0xff]
  %v27 = vld [vmem:[%s2 + $0x20] sm:$0xff]
  %v28 = vld [vmem:[%s2 + $0x28] sm:$0xff]
  %v29 = vld [vmem:[%s2 + $0x30] sm:$0xff]
  %v30 = vld [vmem:[%s2 + $0x38] sm:$0xff]
  %v31 = vld [vmem:[%s2 + $0x40] sm:$0xff]
  %v32 = vld [vmem:[%s2 + $0x48] sm:$0xff]
  %v33 = vld [vmem:[%s2 + $0x50] sm:$0xff]
  %v34 = vld [vmem:[%s2 + $0x58] sm:$0xff]
  %v35 = vld [vmem:[%s2 + $0x60] sm:$0xff]
  %v36 = vld [vmem:[%s2 + $0x68] sm:$0xff]
  %v37 = vld [vmem:[%s2 + $0x70] sm:$0xff]
  %v38 = vld [vmem:[%s2 + $0x78] sm:$0xff]
  %v39 = vld [vmem:[%s2 + $0x80] sm:$0xff]
  %v40 = vld [vmem:[%s2 + $0x88] sm:$0xff]
  %v41 = vld [vmem:[%s2 + $0x90] sm:$0xff]
  %v42 = vld [vmem:[%s2 + $0x98] sm:$0xff]
  %v43 = vld [vmem:[%s2 + $0xa0] sm:$0xff]
  %v44 = vld [vmem:[%s2 + $0xa8] sm:$0xff]
  %v45 = vld [vmem:[%s2 + $0xb0] sm:$0xff]
  %v46 = vld [vmem:[%s2 + $0xb8] sm:$0xff]
  %v47 = vld [vmem:[%s2 + $0xc0] sm:$0xff]
  %v48 = vld [vmem:[%s2 + $0xc8] sm:$0xff]
  %v49 = vld [vmem:[%s2 + $0xd0] sm:$0xff]
  %v50 = vld [vmem:[%s2 + $0xd8] sm:$0xff]
  %v51 = vld [vmem:[%s2 + $0xe0] sm:$0xff]
  %v52 = vld [vmem:[%s2 + $0xe8] sm:$0xff]
  %v53 = vld [vmem:[%s2 + $0xf0] sm:$0xff]
  %v54 = vld [vmem:[%s2 + $0xf8] sm:$0xff]
  %v55 = vld [vmem:[%s2 + $0x100] sm:$0xff]
  %v56 = vld [vmem:[%s2 + $0x108] sm:$0xff]
  %v57 = vld [vmem:[%s2 + $0x110] sm:$0xff]
  %v58 = vld [vmem:[%s2 + $0x118] sm:$0xff]
  %v59 = vld [vmem:[%s2 + $0x120] sm:$0xff]
  %v60 = vld [vmem:[%s2 + $0x128] sm:$0xff]
  %v61 = vld [vmem:[%s2 + $0x130] sm:$0xff]
  %v62 = vld [vmem:[%s2 + $0x138] sm:$0xff]
  %v63 = vld [vmem:[%s2 + $0x140] sm:$0xff]
  %v64 = vld [vmem:[%s2 + $0x148] sm:$0xff]
  %v65 = vld [vmem:[%s2 + $0x150] sm:$0xff]
  %v66 = vld [vmem:[%s2 + $0x158] sm:$0xff]
  %v67 = vld [vmem:[%s2 + $0x160] sm:$0xff]
  %v68 = vld [vmem:[%s2 + $0x168] sm:$0xff]
  %v69 = vld [vmem:[%s2 + $0x170] sm:$0xff]
  %v70 = vld [vmem:[%s2 + $0x178] sm:$0xff]
  %v71 = vld [vmem:[%s2 + $0x180] sm:$0xff]
  %v72 = vld [vmem:[%s2 + $0x188] sm:$0xff]
  %v73 = vld [vmem:[%s2 + $0x190] sm:$0xff]
  %v74 = vld [vmem:[%s2 + $0x198] sm:$0xff]
  %v75 = vld [vmem:[%s2 + $0x1a0] sm:$0xff]
  %v76 = vld [vmem:[%s2 + $0x1a8] sm:$0xff]
  %v77 = vld [vmem:[%s2 + $0x1b0] sm:$0xff]
  %v78 = vld [vmem:[%s2 + $0x1b8] sm:$0xff]
  %v79 = vld [vmem:[%s2 + $0x1c0] sm:$0xff]
  %v80 = vld [vmem:[%s2 + $0x1c8] sm:$0xff]
  %v81 = vld [vmem:[%s2 + $0x1d0] sm:$0xff]
  %v82 = vld [vmem:[%s2 + $0x1d8] sm:$0xff]
  %v83 = vld [vmem:[%s2 + $0x1e0] sm:$0xff]
  %v84 = vld [vmem:[%s2 + $0x1e8] sm:$0xff]
  %v85 = vld [vmem:[%s2 + $0x1f0] sm:$0xff]
  %v86 = vld [vmem:[%s2 + $0x1f8] sm:$0xff]
  %v87 = vld [vmem:[%s2 + $0x200] sm:$0xff]
  %v88 = vld [vmem:[%s2 + $0x208] sm:$0xff]
  %v89 = vld [vmem:[%s2 + $0x210] sm:$0xff]
  %v90 = vld [vmem:[%s2 + $0x218] sm:$0xff]
  %v91 = vld [vmem:[%s2 + $0x220] sm:$0xff]
  %v92 = vld [vmem:[%s2 + $0x228] sm:$0xff]
  %v93 = vld [vmem:[%s2 + $0x230] sm:$0xff]
  %v94 = vld [vmem:[%s2 + $0x238] sm:$0xff]
  %v95 = vld [vmem:[%s2 + $0x240] sm:$0xff]
  %v96 = vld [vmem:[%s2 + $0x248] sm:$0xff]
  %v97 = vld [vmem:[%s2 + $0x250] sm:$0xff]
  %v98 = vld [vmem:[%s2 + $0x258] sm:$0xff]
  %v99 = vld [vmem:[%s2 + $0x260] sm:$0xff]
  %v100 = vld [vmem:[%s2 + $0x268] sm:$0xff]
  %v101 = vld [vmem:[%s2 + $0x270] sm:$0xff]
  %v102 = vld [vmem:[%s2 + $0x278] sm:$0xff]
  %v103 = vld [vmem:[%s2 + $0x280] sm:$0xff]
  %v104 = vld [vmem:[%s2 + $0x288] sm:$0xff]
  %v105 = vld [vmem:[%s2 + $0x290] sm:$0xff]
  %v106 = vld [vmem:[%s2 + $0x298] sm:$0xff]
  %v107 = vld [vmem:[%s1] sm:$0x3f]
  %v109 = vlaneseq
  %v110 = vshrl.u32 %v109, 7
  %v111 = vsub.s32 0, %v110
  %v112 = vrot.slane %v107, %v111
  %v113 = vlaneseq
  %v114 = vshrl.u32 %v113, 7
  %v115 = vsub.s32 1, %v114
  %v116 = vrot.slane %v107, %v115
  %v117 = vlaneseq
  %v118 = vshrl.u32 %v117, 7
  %v119 = vsub.s32 2, %v118
  %v120 = vrot.slane %v107, %v119
  %v121 = vlaneseq
  %v122 = vshrl.u32 %v121, 7
  %v123 = vsub.s32 3, %v122
  %v124 = vrot.slane %v107, %v123
  %v125 = vlaneseq
  %v126 = vshrl.u32 %v125, 7
  %v127 = vsub.s32 4, %v126
  %v128 = vrot.slane %v107, %v127
  %v129 = vlaneseq
  %v130 = vshrl.u32 %v129, 7
  %v131 = vsub.s32 5, %v130
  %v132 = vrot.slane %v107, %v131
  %v139 = vmul.f32 %v23, %v112
  %v140 = vmul.f32 %v24, %v116
  %v141 = vmul.f32 %v25, %v120
  %v142 = vmul.f32 %v26, %v124
  %v143 = vmul.f32 %v27, %v128
  %v144 = vmul.f32 %v28, %v132
  %v145 = vmul.f32 %v29, %v112
  %v146 = vmul.f32 %v30, %v116
  %v147 = vmul.f32 %v31, %v120
  %v148 = vmul.f32 %v32, %v124
  %v149 = vmul.f32 %v33, %v128
  %v150 = vmul.f32 %v34, %v132
  %v151 = vmul.f32 %v35, %v112
  %v152 = vmul.f32 %v36, %v116
  %v153 = vmul.f32 %v37, %v120
  %v154 = vmul.f32 %v38, %v124
  %v155 = vmul.f32 %v39, %v128
  %v156 = vmul.f32 %v40, %v132
  %v157 = vmul.f32 %v41, %v112
  %v158 = vmul.f32 %v42, %v116
  %v159 = vmul.f32 %v43, %v120
  %v160 = vmul.f32 %v44, %v124
  %v161 = vmul.f32 %v45, %v128
  %v162 = vmul.f32 %v46, %v132
  %v163 = vmul.f32 %v47, %v112
  %v164 = vmul.f32 %v48, %v116
  %v165 = vmul.f32 %v49, %v120
  %v166 = vmul.f32 %v50, %v124
  %v167 = vmul.f32 %v51, %v128
  %v168 = vmul.f32 %v52, %v132
  %v169 = vmul.f32 %v53, %v112
  %v170 = vmul.f32 %v54, %v116
  %v171 = vmul.f32 %v55, %v120
  %v172 = vmul.f32 %v56, %v124
  %v173 = vmul.f32 %v57, %v128
  %v174 = vmul.f32 %v58, %v132
  %v175 = vmul.f32 %v59, %v112
  %v176 = vmul.f32 %v60, %v116
  %v177 = vmul.f32 %v61, %v120
  %v178 = vmul.f32 %v62, %v124
  %v179 = vmul.f32 %v63, %v128
  %v180 = vmul.f32 %v64, %v132
  %v181 = vmul.f32 %v65, %v112
  %v182 = vmul.f32 %v66, %v116
  %v183 = vmul.f32 %v67, %v120
  %v184 = vmul.f32 %v68, %v124
  %v185 = vmul.f32 %v69, %v128
  %v186 = vmul.f32 %v70, %v132
  %v187 = vmul.f32 %v71, %v112
  %v188 = vmul.f32 %v72, %v116
  %v189 = vmul.f32 %v73, %v120
  %v190 = vmul.f32 %v74, %v124
  %v191 = vmul.f32 %v75, %v128
  %v192 = vmul.f32 %v76, %v132
  %v193 = vmul.f32 %v77, %v112
  %v194 = vmul.f32 %v78, %v116
  %v195 = vmul.f32 %v79, %v120
  %v196 = vmul.f32 %v80, %v124
  %v197 = vmul.f32 %v81, %v128
  %v198 = vmul.f32 %v82, %v132
  %v199 = vmul.f32 %v83, %v112
  %v200 = vmul.f32 %v84, %v116
  %v201 = vmul.f32 %v85, %v120
  %v202 = vmul.f32 %v86, %v124
  %v203 = vmul.f32 %v87, %v128
  %v204 = vmul.f32 %v88, %v132
  %v205 = vmul.f32 %v89, %v112
  %v206 = vmul.f32 %v90, %v116
  %v207 = vmul.f32 %v91, %v120
  %v208 = vmul.f32 %v92, %v124
  %v209 = vmul.f32 %v93, %v128
  %v210 = vmul.f32 %v94, %v132
  %v211 = vmul.f32 %v95, %v112
  %v212 = vmul.f32 %v96, %v116
  %v213 = vmul.f32 %v97, %v120
  %v214 = vmul.f32 %v98, %v124
  %v215 = vmul.f32 %v99, %v128
  %v216 = vmul.f32 %v100, %v132
  %v217 = vmul.f32 %v101, %v112
  %v218 = vmul.f32 %v102, %v116
  %v219 = vmul.f32 %v103, %v120
  %v220 = vmul.f32 %v104, %v124
  %v221 = vmul.f32 %v105, %v128
  %v222 = vmul.f32 %v106, %v132
  %v223 = vld [vmem:[%s0] sm:$0xff]
  %v224 = vld [vmem:[%s0 + $0x8] sm:$0xff]
  %v225 = vld [vmem:[%s0 + $0x10] sm:$0xff]
  %v226 = vld [vmem:[%s0 + $0x18] sm:$0xff]
  %v227 = vld [vmem:[%s0 + $0x20] sm:$0xff]
  %v228 = vld [vmem:[%s0 + $0x28] sm:$0xff]
  %v229 = vld [vmem:[%s0 + $0x30] sm:$0xff]
  %v230 = vld [vmem:[%s0 + $0x38] sm:$0xff]
  %v231 = vld [vmem:[%s0 + $0x40] sm:$0xff]
  %v232 = vld [vmem:[%s0 + $0x48] sm:$0xff]
  %v233 = vld [vmem:[%s0 + $0x50] sm:$0xff]
  %v234 = vld [vmem:[%s0 + $0x58] sm:$0xff]
  %v235 = vld [vmem:[%s0 + $0x60] sm:$0xff]
  %v236 = vld [vmem:[%s0 + $0x68] sm:$0xff]
  %v237 = vld [vmem:[%s0 + $0x70] sm:$0xff]
  %v238 = vld [vmem:[%s0 + $0x78] sm:$0xff]
  %v239 = vld [vmem:[%s0 + $0x80] sm:$0xff]
  %v240 = vld [vmem:[%s0 + $0x88] sm:$0xff]
  %v241 = vld [vmem:[%s0 + $0x90] sm:$0xff]
  %v242 = vld [vmem:[%s0 + $0x98] sm:$0xff]
  %v243 = vld [vmem:[%s0 + $0xa0] sm:$0xff]
  %v244 = vld [vmem:[%s0 + $0xa8] sm:$0xff]
  %v245 = vld [vmem:[%s0 + $0xb0] sm:$0xff]
  %v246 = vld [vmem:[%s0 + $0xb8] sm:$0xff]
  %v247 = vld [vmem:[%s0 + $0xc0] sm:$0xff]
  %v248 = vld [vmem:[%s0 + $0xc8] sm:$0xff]
  %v249 = vld [vmem:[%s0 + $0xd0] sm:$0xff]
  %v250 = vld [vmem:[%s0 + $0xd8] sm:$0xff]
  %v251 = vld [vmem:[%s0 + $0xe0] sm:$0xff]
  %v252 = vld [vmem:[%s0 + $0xe8] sm:$0xff]
  %v253 = vld [vmem:[%s0 + $0xf0] sm:$0xff]
  %v254 = vld [vmem:[%s0 + $0xf8] sm:$0xff]
  %v255 = vld [vmem:[%s0 + $0x100] sm:$0xff]
  %v256 = vld [vmem:[%s0 + $0x108] sm:$0xff]
  %v257 = vld [vmem:[%s0 + $0x110] sm:$0xff]
  %v258 = vld [vmem:[%s0 + $0x118] sm:$0xff]
  %v259 = vld [vmem:[%s0 + $0x120] sm:$0xff]
  %v260 = vld [vmem:[%s0 + $0x128] sm:$0xff]
  %v261 = vld [vmem:[%s0 + $0x130] sm:$0xff]
  %v262 = vld [vmem:[%s0 + $0x138] sm:$0xff]
  %v263 = vld [vmem:[%s0 + $0x140] sm:$0xff]
  %v264 = vld [vmem:[%s0 + $0x148] sm:$0xff]
  %v265 = vld [vmem:[%s0 + $0x150] sm:$0xff]
  %v266 = vld [vmem:[%s0 + $0x158] sm:$0xff]
  %v267 = vld [vmem:[%s0 + $0x160] sm:$0xff]
  %v268 = vld [vmem:[%s0 + $0x168] sm:$0xff]
  %v269 = vld [vmem:[%s0 + $0x170] sm:$0xff]
  %v270 = vld [vmem:[%s0 + $0x178] sm:$0xff]
  %v271 = vld [vmem:[%s0 + $0x180] sm:$0xff]
  %v272 = vld [vmem:[%s0 + $0x188] sm:$0xff]
  %v273 = vld [vmem:[%s0 + $0x190] sm:$0xff]
  %v274 = vld [vmem:[%s0 + $0x198] sm:$0xff]
  %v275 = vld [vmem:[%s0 + $0x1a0] sm:$0xff]
  %v276 = vld [vmem:[%s0 + $0x1a8] sm:$0xff]
  %v277 = vld [vmem:[%s0 + $0x1b0] sm:$0xff]
  %v278 = vld [vmem:[%s0 + $0x1b8] sm:$0xff]
  %v279 = vld [vmem:[%s0 + $0x1c0] sm:$0xff]
  %v280 = vld [vmem:[%s0 + $0x1c8] sm:$0xff]
  %v281 = vld [vmem:[%s0 + $0x1d0] sm:$0xff]
  %v282 = vld [vmem:[%s0 + $0x1d8] sm:$0xff]
  %v283 = vld [vmem:[%s0 + $0x1e0] sm:$0xff]
  %v284 = vld [vmem:[%s0 + $0x1e8] sm:$0xff]
  %v285 = vld [vmem:[%s0 + $0x1f0] sm:$0xff]
  %v286 = vld [vmem:[%s0 + $0x1f8] sm:$0xff]
  %v287 = vld [vmem:[%s0 + $0x200] sm:$0xff]
  %v288 = vld [vmem:[%s0 + $0x208] sm:$0xff]
  %v289 = vld [vmem:[%s0 + $0x210] sm:$0xff]
  %v290 = vld [vmem:[%s0 + $0x218] sm:$0xff]
  %v291 = vld [vmem:[%s0 + $0x220] sm:$0xff]
  %v292 = vld [vmem:[%s0 + $0x228] sm:$0xff]
  %v293 = vld [vmem:[%s0 + $0x230] sm:$0xff]
  %v294 = vld [vmem:[%s0 + $0x238] sm:$0xff]
  %v295 = vld [vmem:[%s0 + $0x240] sm:$0xff]
  %v296 = vld [vmem:[%s0 + $0x248] sm:$0xff]
  %v297 = vld [vmem:[%s0 + $0x250] sm:$0xff]
  %v298 = vld [vmem:[%s0 + $0x258] sm:$0xff]
  %v299 = vld [vmem:[%s0 + $0x260] sm:$0xff]
  %v300 = vld [vmem:[%s0 + $0x268] sm:$0xff]
  %v301 = vld [vmem:[%s0 + $0x270] sm:$0xff]
  %v302 = vld [vmem:[%s0 + $0x278] sm:$0xff]
  %v303 = vld [vmem:[%s0 + $0x280] sm:$0xff]
  %v304 = vld [vmem:[%s0 + $0x288] sm:$0xff]
  %v305 = vld [vmem:[%s0 + $0x290] sm:$0xff]
  %v306 = vld [vmem:[%s0 + $0x298] sm:$0xff]
  %v307 = vld [vmem:[%s0 + $0x2a0] sm:$0xff]
  %v308 = vld [vmem:[%s0 + $0x2a8] sm:$0xff]
  %v309 = vld [vmem:[%s0 + $0x2b0] sm:$0xff]
  %v310 = vld [vmem:[%s0 + $0x2b8] sm:$0xff]
  %v311 = vld [vmem:[%s0 + $0x2c0] sm:$0xff]
  %v312 = vld [vmem:[%s0 + $0x2c8] sm:$0xff]
  %v313 = vld [vmem:[%s0 + $0x2d0] sm:$0xff]
  %v314 = vld [vmem:[%s0 + $0x2d8] sm:$0xff]
  %v315 = vld [vmem:[%s0 + $0x2e0] sm:$0xff]
  %v316 = vld [vmem:[%s0 + $0x2e8] sm:$0xff]
  %v317 = vld [vmem:[%s0 + $0x2f0] sm:$0xff]
  %v318 = vld [vmem:[%s0 + $0x2f8] sm:$0xff]
  %v319 = vld [vmem:[%s0 + $0x300] sm:$0xff]
  %v320 = vld [vmem:[%s0 + $0x308] sm:$0xff]
  %v321 = vld [vmem:[%s0 + $0x310] sm:$0xff]
  %v322 = vld [vmem:[%s0 + $0x318] sm:$0xff]
  %v323 = vld [vmem:[%s0 + $0x320] sm:$0xff]
  %v324 = vld [vmem:[%s0 + $0x328] sm:$0xff]
  %v325 = vld [vmem:[%s0 + $0x330] sm:$0xff]
  %v326 = vld [vmem:[%s0 + $0x338] sm:$0xff]
  %v327 = vld [vmem:[%s0 + $0x340] sm:$0xff]
  %v328 = vld [vmem:[%s0 + $0x348] sm:$0xff]
  %v329 = vld [vmem:[%s0 + $0x350] sm:$0xff]
  %v330 = vld [vmem:[%s0 + $0x358] sm:$0xff]
  %v331 = vld [vmem:[%s0 + $0x360] sm:$0xff]
  %v332 = vld [vmem:[%s0 + $0x368] sm:$0xff]
  %v333 = vld [vmem:[%s0 + $0x370] sm:$0xff]
  %v334 = vld [vmem:[%s0 + $0x378] sm:$0xff]
  %v335 = vld [vmem:[%s0 + $0x380] sm:$0xff]
  %v336 = vld [vmem:[%s0 + $0x388] sm:$0xff]
  %v337 = vld [vmem:[%s0 + $0x390] sm:$0xff]
  %v338 = vld [vmem:[%s0 + $0x398] sm:$0xff]
  %v339 = vld [vmem:[%s0 + $0x3a0] sm:$0xff]
  %v340 = vld [vmem:[%s0 + $0x3a8] sm:$0xff]
  %v341 = vld [vmem:[%s0 + $0x3b0] sm:$0xff]
  %v342 = vld [vmem:[%s0 + $0x3b8] sm:$0xff]
  %v343 = vld [vmem:[%s0 + $0x3c0] sm:$0xff]
  %v344 = vld [vmem:[%s0 + $0x3c8] sm:$0xff]
  %v345 = vld [vmem:[%s0 + $0x3d0] sm:$0xff]
  %v346 = vld [vmem:[%s0 + $0x3d8] sm:$0xff]
  %v347 = vld [vmem:[%s0 + $0x3e0] sm:$0xff]
  %v348 = vld [vmem:[%s0 + $0x3e8] sm:$0xff]
  %v349 = vld [vmem:[%s0 + $0x3f0] sm:$0xff]
  %v350 = vld [vmem:[%s0 + $0x3f8] sm:$0xff]
  %v351 = vld [vmem:[%s0 + $0x400] sm:$0xff]
  %v352 = vld [vmem:[%s0 + $0x408] sm:$0xff]
  %v353 = vld [vmem:[%s0 + $0x410] sm:$0xff]
  %v354 = vld [vmem:[%s0 + $0x418] sm:$0xff]
  %v355 = vld [vmem:[%s0 + $0x420] sm:$0xff]
  %v356 = vld [vmem:[%s0 + $0x428] sm:$0xff]
  %v357 = vld [vmem:[%s0 + $0x430] sm:$0xff]
  %v358 = vld [vmem:[%s0 + $0x438] sm:$0xff]
  %v359 = vld [vmem:[%s0 + $0x440] sm:$0xff]
  %v360 = vld [vmem:[%s0 + $0x448] sm:$0xff]
  %v361 = vld [vmem:[%s0 + $0x450] sm:$0xff]
  %v362 = vld [vmem:[%s0 + $0x458] sm:$0xff]
  %v363 = vld [vmem:[%s0 + $0x460] sm:$0xff]
  %v364 = vld [vmem:[%s0 + $0x468] sm:$0xff]
  %v365 = vld [vmem:[%s0 + $0x470] sm:$0xff]
  %v366 = vld [vmem:[%s0 + $0x478] sm:$0xff]
  %v367 = vld [vmem:[%s0 + $0x480] sm:$0xff]
  %v368 = vld [vmem:[%s0 + $0x488] sm:$0xff]
  %v369 = vld [vmem:[%s0 + $0x490] sm:$0xff]
  %v370 = vld [vmem:[%s0 + $0x498] sm:$0xff]
  %v371 = vld [vmem:[%s0 + $0x4a0] sm:$0xff]
  %v372 = vld [vmem:[%s0 + $0x4a8] sm:$0xff]
  %v373 = vld [vmem:[%s0 + $0x4b0] sm:$0xff]
  %v374 = vld [vmem:[%s0 + $0x4b8] sm:$0xff]
  %v375 = vld [vmem:[%s0 + $0x4c0] sm:$0xff]
  %v376 = vld [vmem:[%s0 + $0x4c8] sm:$0xff]
  %v377 = vld [vmem:[%s0 + $0x4d0] sm:$0xff]
  %v378 = vld [vmem:[%s0 + $0x4d8] sm:$0xff]
  %v379 = vld [vmem:[%s0 + $0x4e0] sm:$0xff]
  %v380 = vld [vmem:[%s0 + $0x4e8] sm:$0xff]
  %v381 = vld [vmem:[%s0 + $0x4f0] sm:$0xff]
  %v382 = vld [vmem:[%s0 + $0x4f8] sm:$0xff]
  %v383 = vld [vmem:[%s0 + $0x500] sm:$0xff]
  %v384 = vld [vmem:[%s0 + $0x508] sm:$0xff]
  %v385 = vld [vmem:[%s0 + $0x510] sm:$0xff]
  %v386 = vld [vmem:[%s0 + $0x518] sm:$0xff]
  %v387 = vld [vmem:[%s0 + $0x520] sm:$0xff]
  %v388 = vld [vmem:[%s0 + $0x528] sm:$0xff]
  %v389 = vld [vmem:[%s0 + $0x530] sm:$0xff]
  %v390 = vld [vmem:[%s0 + $0x538] sm:$0xff]
  %vm391 = vcmask 261120
  %v393 = vsel %vm391, %v144, 0
  %v396 = vsel %vm391, %v150, 0
  %v399 = vsel %vm391, %v156, 0
  %v402 = vsel %vm391, %v162, 0
  %v405 = vsel %vm391, %v168, 0
  %v408 = vsel %vm391, %v174, 0
  %v411 = vsel %vm391, %v180, 0
  %v414 = vsel %vm391, %v186, 0
  %v417 = vsel %vm391, %v192, 0
  %v420 = vsel %vm391, %v198, 0
  %v423 = vsel %vm391, %v204, 0
  %v426 = vsel %vm391, %v210, 0
  %v429 = vsel %vm391, %v216, 0
  %v432 = vsel %vm391, %v222, 0
  %434 = vmatprep.subr.mxu0 %v224
  %435 = vmatpush1.msra.mxu0 %v223
  %436 = vmatprep.subr.mxu0 %v226
  %437 = vmatpush1.msra.mxu0 %v225
  %438 = vmatprep.subr.mxu0 %v228
  %439 = vmatpush1.msra.mxu0 %v227
  %440 = vmatprep.subr.mxu0 %v230
  %441 = vmatpush1.msra.mxu0 %v229
  %442 = vmatprep.subr.mxu0 %v232
  %443 = vmatpush1.msra.mxu0 %v231
  %444 = vmatprep.subr.mxu0 %v234
  %445 = vmatpush1.msra.mxu0 %v233
  %446 = vmatprep.subr.mxu0 %v236
  %447 = vmatpush1.msra.mxu0 %v235
  %448 = vmatprep.subr.mxu0 %v238
  %449 = vmatpush1.msra.mxu0 %v237
  %450 = vmatprep.subr.mxu0 %v240
  %451 = vmatpush1.msra.mxu0 %v239
  %452 = vmatprep.subr.mxu0 %v242
  %453 = vmatpush1.msra.mxu0 %v241
  %454 = vmatprep.subr.mxu0 %v244
  %455 = vmatpush1.msra.mxu0 %v243
  %456 = vmatprep.subr.mxu0 %v246
  %457 = vmatpush1.msra.mxu0 %v245
  %458 = vmatprep.subr.mxu0 %v248
  %459 = vmatpush1.msra.mxu0 %v247
  %460 = vmatprep.subr.mxu0 %v250
  %461 = vmatpush1.msra.mxu0 %v249
  %462 = vmatprep.subr.mxu0 %v252
  %463 = vmatpush1.msra.mxu0 %v251
  %464 = vmatprep.subr.mxu0 %v254
  %465 = vmatpush1.msra.mxu0 %v253
  %466 = vmatprep.subr.mxu0 %v256
  %467 = vmatpush1.msra.mxu0 %v255
  %468 = vmatprep.subr.mxu0 %v258
  %469 = vmatpush1.msra.mxu0 %v257
  %470 = vmatprep.subr.mxu0 %v260
  %471 = vmatpush1.msra.mxu0 %v259
  %472 = vmatprep.subr.mxu0 %v262
  %473 = vmatpush1.msra.mxu0 %v261
  %474 = vmatprep.subr.mxu0 %v264
  %475 = vmatpush1.msra.mxu0 %v263
  %476 = vmatprep.subr.mxu0 %v266
  %477 = vmatpush1.msra.mxu0 %v265
  %478 = vmatprep.subr.mxu0 %v268
  %479 = vmatpush1.msra.mxu0 %v267
  %480 = vmatprep.subr.mxu0 %v270
  %481 = vmatpush1.msra.mxu0 %v269
  %482 = vmatprep.subr.mxu0 %v272
  %483 = vmatpush1.msra.mxu0 %v271
  %484 = vmatprep.subr.mxu0 %v274
  %485 = vmatpush1.msra.mxu0 %v273
  %486 = vmatprep.subr.mxu0 %v276
  %487 = vmatpush1.msra.mxu0 %v275
  %488 = vmatprep.subr.mxu0 %v278
  %489 = vmatpush1.msra.mxu0 %v277
  %490 = vmatprep.subr.mxu0 %v280
  %491 = vmatpush1.msra.mxu0 %v279
  %492 = vmatprep.subr.mxu0 %v282
  %493 = vmatpush1.msra.mxu0 %v281
  %494 = vmatprep.subr.mxu0 %v284
  %495 = vmatpush1.msra.mxu0 %v283
  %496 = vmatprep.subr.mxu0 %v286
  %497 = vmatpush1.msra.mxu0 %v285
  %498 = vmatprep.mubr.f32.mxu0 %v140
  %499 = vmatmul.mubr.f32.gmra.mrb[0].mxu0 %v139
  %v500 = vpop.f32.mrb[0].mxu0
  %v501 = vadd.f32 0.0, %v500
  %v502 = vpop.f32.mrb[0].mxu0
  %v503 = vadd.f32 0.0, %v502
  %504 = vmatprep.mubr.f32.mxu0 %v146
  %505 = vmatmul.mubr.f32.gmra.mrb[0].mxu0 %v145
  %v506 = vpop.f32.mrb[0].mxu0
  %v507 = vadd.f32 0.0, %v506
  %v508 = vpop.f32.mrb[0].mxu0
  %v509 = vadd.f32 0.0, %v508
  %510 = vmatprep.mubr.f32.mxu0 %v152
  %511 = vmatmul.mubr.f32.gmra.mrb[0].mxu0 %v151
  %v512 = vpop.f32.mrb[0].mxu0
  %v513 = vadd.f32 0.0, %v512
  %v514 = vpop.f32.mrb[0].mxu0
  %v515 = vadd.f32 0.0, %v514
  %516 = vmatprep.mubr.f32.mxu0 %v158
  %517 = vmatmul.mubr.f32.gmra.mrb[0].mxu0 %v157
  %v518 = vpop.f32.mrb[0].mxu0
  %v519 = vadd.f32 0.0, %v518
  %v520 = vpop.f32.mrb[0].mxu0
  %v521 = vadd.f32 0.0, %v520
  %522 = vmatprep.mubr.f32.mxu0 %v164
  %523 = vmatmul.mubr.f32.gmra.mrb[0].mxu0 %v163
  %v524 = vpop.f32.mrb[0].mxu0
  %v525 = vadd.f32 0.0, %v524
  %v526 = vpop.f32.mrb[0].mxu0
  %v527 = vadd.f32 0.0, %v526
  %528 = vmatprep.mubr.f32.mxu0 %v170
  %529 = vmatmul.mubr.f32.gmra.mrb[0].mxu0 %v169
  %v530 = vpop.f32.mrb[0].mxu0
  %v531 = vadd.f32 0.0, %v530
  %v532 = vpop.f32.mrb[0].mxu0
  %v533 = vadd.f32 0.0, %v532
  %534 = vmatprep.mubr.f32.mxu0 %v176
  %535 = vmatmul.mubr.f32.gmra.mrb[0].mxu0 %v175
  %v536 = vpop.f32.mrb[0].mxu0
  %v537 = vadd.f32 0.0, %v536
  %v538 = vpop.f32.mrb[0].mxu0
  %v539 = vadd.f32 0.0, %v538
  %540 = vmatprep.mubr.f32.mxu0 %v182
  %541 = vmatmul.mubr.f32.gmra.mrb[0].mxu0 %v181
  %v542 = vpop.f32.mrb[0].mxu0
  %v543 = vadd.f32 0.0, %v542
  %v544 = vpop.f32.mrb[0].mxu0
  %v545 = vadd.f32 0.0, %v544
  %546 = vmatprep.mubr.f32.mxu0 %v188
  %547 = vmatmul.mubr.f32.gmra.mrb[0].mxu0 %v187
  %v548 = vpop.f32.mrb[0].mxu0
  %v549 = vadd.f32 0.0, %v548
  %v550 = vpop.f32.mrb[0].mxu0
  %v551 = vadd.f32 0.0, %v550
  %552 = vmatprep.mubr.f32.mxu0 %v194
  %553 = vmatmul.mubr.f32.gmra.mrb[0].mxu0 %v193
  %v554 = vpop.f32.mrb[0].mxu0
  %v555 = vadd.f32 0.0, %v554
  %v556 = vpop.f32.mrb[0].mxu0
  %v557 = vadd.f32 0.0, %v556
  %558 = vmatprep.mubr.f32.mxu0 %v200
  %559 = vmatmul.mubr.f32.gmra.mrb[0].mxu0 %v199
  %v560 = vpop.f32.mrb[0].mxu0
  %v561 = vadd.f32 0.0, %v560
  %v562 = vpop.f32.mrb[0].mxu0
  %v563 = vadd.f32 0.0, %v562
  %564 = vmatprep.mubr.f32.mxu0 %v206
  %565 = vmatmul.mubr.f32.gmra.mrb[0].mxu0 %v205
  %v566 = vpop.f32.mrb[0].mxu0
  %v567 = vadd.f32 0.0, %v566
  %v568 = vpop.f32.mrb[0].mxu0
  %v569 = vadd.f32 0.0, %v568
  %570 = vmatprep.mubr.f32.mxu0 %v212
  %571 = vmatmul.mubr.f32.gmra.mrb[0].mxu0 %v211
  %v572 = vpop.f32.mrb[0].mxu0
  %v573 = vadd.f32 0.0, %v572
  %v574 = vpop.f32.mrb[0].mxu0
  %v575 = vadd.f32 0.0, %v574
  %576 = vmatprep.mubr.f32.mxu0 %v218
  %577 = vmatmul.mubr.f32.gmra.mrb[0].mxu0 %v217
  %v578 = vpop.f32.mrb[0].mxu0
  %v579 = vadd.f32 0.0, %v578
  %v580 = vpop.f32.mrb[0].mxu0
  %v581 = vadd.f32 0.0, %v580
  %582 = vdwg.mxu0
  %583 = vmatprep.subr.mxu0 %v288
  %584 = vmatpush1.msra.mxu0 %v287
  %585 = vmatprep.subr.mxu0 %v290
  %586 = vmatpush1.msra.mxu0 %v289
  %587 = vmatprep.subr.mxu0 %v292
  %588 = vmatpush1.msra.mxu0 %v291
  %589 = vmatprep.subr.mxu0 %v294
  %590 = vmatpush1.msra.mxu0 %v293
  %591 = vmatprep.subr.mxu0 %v296
  %592 = vmatpush1.msra.mxu0 %v295
  %593 = vmatprep.subr.mxu0 %v298
  %594 = vmatpush1.msra.mxu0 %v297
  %595 = vmatprep.subr.mxu0 %v300
  %596 = vmatpush1.msra.mxu0 %v299
  %597 = vmatprep.subr.mxu0 %v302
  %598 = vmatpush1.msra.mxu0 %v301
  %599 = vmatprep.subr.mxu0 %v304
  %600 = vmatpush1.msra.mxu0 %v303
  %601 = vmatprep.subr.mxu0 %v306
  %602 = vmatpush1.msra.mxu0 %v305
  %603 = vmatprep.subr.mxu0 %v308
  %604 = vmatpush1.msra.mxu0 %v307
  %605 = vmatprep.subr.mxu0 %v310
  %606 = vmatpush1.msra.mxu0 %v309
  %607 = vmatprep.subr.mxu0 %v312
  %608 = vmatpush1.msra.mxu0 %v311
  %609 = vmatprep.subr.mxu0 %v314
  %610 = vmatpush1.msra.mxu0 %v313
  %611 = vmatprep.subr.mxu0 %v316
  %612 = vmatpush1.msra.mxu0 %v315
  %613 = vmatprep.subr.mxu0 %v318
  %614 = vmatpush1.msra.mxu0 %v317
  %615 = vmatprep.subr.mxu0 %v320
  %616 = vmatpush1.msra.mxu0 %v319
  %617 = vmatprep.subr.mxu0 %v322
  %618 = vmatpush1.msra.mxu0 %v321
  %619 = vmatprep.subr.mxu0 %v324
  %620 = vmatpush1.msra.mxu0 %v323
  %621 = vmatprep.subr.mxu0 %v326
  %622 = vmatpush1.msra.mxu0 %v325
  %623 = vmatprep.subr.mxu0 %v328
  %624 = vmatpush1.msra.mxu0 %v327
  %625 = vmatprep.subr.mxu0 %v330
  %626 = vmatpush1.msra.mxu0 %v329
  %627 = vmatprep.subr.mxu0 %v332
  %628 = vmatpush1.msra.mxu0 %v331
  %629 = vmatprep.subr.mxu0 %v334
  %630 = vmatpush1.msra.mxu0 %v333
  %631 = vmatprep.subr.mxu0 %v336
  %632 = vmatpush1.msra.mxu0 %v335
  %633 = vmatprep.subr.mxu0 %v338
  %634 = vmatpush1.msra.mxu0 %v337
  %635 = vmatprep.subr.mxu0 %v340
  %636 = vmatpush1.msra.mxu0 %v339
  %637 = vmatprep.subr.mxu0 %v342
  %638 = vmatpush1.msra.mxu0 %v341
  %639 = vmatprep.subr.mxu0 %v344
  %640 = vmatpush1.msra.mxu0 %v343
  %641 = vmatprep.subr.mxu0 %v346
  %642 = vmatpush1.msra.mxu0 %v345
  %643 = vmatprep.subr.mxu0 %v348
  %644 = vmatpush1.msra.mxu0 %v347
  %645 = vmatprep.subr.mxu0 %v350
  %646 = vmatpush1.msra.mxu0 %v349
  %647 = vmatprep.mubr.f32.mxu0 %v142
  %648 = vmatmul.mubr.f32.gmra.mrb[0].mxu0 %v141
  %v649 = vpop.f32.mrb[0].mxu0
  %v650 = vadd.f32 %v501, %v649
  %v651 = vpop.f32.mrb[0].mxu0
  %v652 = vadd.f32 %v503, %v651
  %653 = vmatprep.mubr.f32.mxu0 %v148
  %654 = vmatmul.mubr.f32.gmra.mrb[0].mxu0 %v147
  %v655 = vpop.f32.mrb[0].mxu0
  %v656 = vadd.f32 %v507, %v655
  %v657 = vpop.f32.mrb[0].mxu0
  %v658 = vadd.f32 %v509, %v657
  %659 = vmatprep.mubr.f32.mxu0 %v154
  %660 = vmatmul.mubr.f32.gmra.mrb[0].mxu0 %v153
  %v661 = vpop.f32.mrb[0].mxu0
  %v662 = vadd.f32 %v513, %v661
  %v663 = vpop.f32.mrb[0].mxu0
  %v664 = vadd.f32 %v515, %v663
  %665 = vmatprep.mubr.f32.mxu0 %v160
  %666 = vmatmul.mubr.f32.gmra.mrb[0].mxu0 %v159
  %v667 = vpop.f32.mrb[0].mxu0
  %v668 = vadd.f32 %v519, %v667
  %v669 = vpop.f32.mrb[0].mxu0
  %v670 = vadd.f32 %v521, %v669
  %671 = vmatprep.mubr.f32.mxu0 %v166
  %672 = vmatmul.mubr.f32.gmra.mrb[0].mxu0 %v165
  %v673 = vpop.f32.mrb[0].mxu0
  %v674 = vadd.f32 %v525, %v673
  %v675 = vpop.f32.mrb[0].mxu0
  %v676 = vadd.f32 %v527, %v675
  %677 = vmatprep.mubr.f32.mxu0 %v172
  %678 = vmatmul.mubr.f32.gmra.mrb[0].mxu0 %v171
  %v679 = vpop.f32.mrb[0].mxu0
  %v680 = vadd.f32 %v531, %v679
  %v681 = vpop.f32.mrb[0].mxu0
  %v682 = vadd.f32 %v533, %v681
  %683 = vmatprep.mubr.f32.mxu0 %v178
  %684 = vmatmul.mubr.f32.gmra.mrb[0].mxu0 %v177
  %v685 = vpop.f32.mrb[0].mxu0
  %v686 = vadd.f32 %v537, %v685
  %v687 = vpop.f32.mrb[0].mxu0
  %v688 = vadd.f32 %v539, %v687
  %689 = vmatprep.mubr.f32.mxu0 %v184
  %690 = vmatmul.mubr.f32.gmra.mrb[0].mxu0 %v183
  %v691 = vpop.f32.mrb[0].mxu0
  %v692 = vadd.f32 %v543, %v691
  %v693 = vpop.f32.mrb[0].mxu0
  %v694 = vadd.f32 %v545, %v693
  %695 = vmatprep.mubr.f32.mxu0 %v190
  %696 = vmatmul.mubr.f32.gmra.mrb[0].mxu0 %v189
  %v697 = vpop.f32.mrb[0].mxu0
  %v698 = vadd.f32 %v549, %v697
  %v699 = vpop.f32.mrb[0].mxu0
  %v700 = vadd.f32 %v551, %v699
  %701 = vmatprep.mubr.f32.mxu0 %v196
  %702 = vmatmul.mubr.f32.gmra.mrb[0].mxu0 %v195
  %v703 = vpop.f32.mrb[0].mxu0
  %v704 = vadd.f32 %v555, %v703
  %v705 = vpop.f32.mrb[0].mxu0
  %v706 = vadd.f32 %v557, %v705
  %707 = vmatprep.mubr.f32.mxu0 %v202
  %708 = vmatmul.mubr.f32.gmra.mrb[0].mxu0 %v201
  %v709 = vpop.f32.mrb[0].mxu0
  %v710 = vadd.f32 %v561, %v709
  %v711 = vpop.f32.mrb[0].mxu0
  %v712 = vadd.f32 %v563, %v711
  %713 = vmatprep.mubr.f32.mxu0 %v208
  %714 = vmatmul.mubr.f32.gmra.mrb[0].mxu0 %v207
  %v715 = vpop.f32.mrb[0].mxu0
  %v716 = vadd.f32 %v567, %v715
  %v717 = vpop.f32.mrb[0].mxu0
  %v718 = vadd.f32 %v569, %v717
  %719 = vmatprep.mubr.f32.mxu0 %v214
  %720 = vmatmul.mubr.f32.gmra.mrb[0].mxu0 %v213
  %v721 = vpop.f32.mrb[0].mxu0
  %v722 = vadd.f32 %v573, %v721
  %v723 = vpop.f32.mrb[0].mxu0
  %v724 = vadd.f32 %v575, %v723
  %725 = vmatprep.mubr.f32.mxu0 %v220
  %726 = vmatmul.mubr.f32.gmra.mrb[0].mxu0 %v219
  %v727 = vpop.f32.mrb[0].mxu0
  %v728 = vadd.f32 %v579, %v727
  %v729 = vpop.f32.mrb[0].mxu0
  %v730 = vadd.f32 %v581, %v729
  %731 = vdwg.mxu0
  %732 = vmatprep.subr.mxu0 %v352
  %733 = vmatpush1.msra.mxu0 %v351
  %734 = vmatprep.subr.mxu0 %v354
  %735 = vmatpush1.msra.mxu0 %v353
  %736 = vmatprep.subr.mxu0 %v356
  %737 = vmatpush1.msra.mxu0 %v355
  %738 = vmatprep.subr.mxu0 %v358
  %739 = vmatpush1.msra.mxu0 %v357
  %740 = vmatprep.subr.mxu0 %v360
  %741 = vmatpush1.msra.mxu0 %v359
  %742 = vmatprep.subr.mxu0 %v362
  %743 = vmatpush1.msra.mxu0 %v361
  %744 = vmatprep.subr.mxu0 %v364
  %745 = vmatpush1.msra.mxu0 %v363
  %746 = vmatprep.subr.mxu0 %v366
  %747 = vmatpush1.msra.mxu0 %v365
  %748 = vmatprep.subr.mxu0 %v368
  %749 = vmatpush1.msra.mxu0 %v367
  %750 = vmatprep.subr.mxu0 %v370
  %751 = vmatpush1.msra.mxu0 %v369
  %752 = vmatprep.subr.mxu0 %v372
  %753 = vmatpush1.msra.mxu0 %v371
  %754 = vmatprep.subr.mxu0 %v374
  %755 = vmatpush1.msra.mxu0 %v373
  %756 = vmatprep.subr.mxu0 %v376
  %757 = vmatpush1.msra.mxu0 %v375
  %758 = vmatprep.subr.mxu0 %v378
  %759 = vmatpush1.msra.mxu0 %v377
  %760 = vmatprep.subr.mxu0 %v380
  %761 = vmatpush1.msra.mxu0 %v379
  %762 = vmatprep.subr.mxu0 %v382
  %763 = vmatpush1.msra.mxu0 %v381
  %764 = vmatprep.subr.mxu0 %v384
  %765 = vmatpush1.msra.mxu0 %v383
  %766 = vmatprep.subr.mxu0 %v386
  %767 = vmatpush1.msra.mxu0 %v385
  %768 = vmatprep.subr.mxu0 %v388
  %769 = vmatpush1.msra.mxu0 %v387
  %770 = vmatprep.subr.mxu0 %v390
  %771 = vmatpush1.msra.mxu0 %v389
  %772 = vmatprep.subr.mxu0 0.0
  %773 = vmatpush1.msra.mxu0 0.0
  %774 = vmatprep.subr.mxu0 0.0
  %775 = vmatpush1.msra.mxu0 0.0
  %776 = vmatprep.subr.mxu0 0.0
  %777 = vmatpush1.msra.mxu0 0.0
  %778 = vmatprep.subr.mxu0 0.0
  %779 = vmatpush1.msra.mxu0 0.0
  %780 = vmatprep.subr.mxu0 0.0
  %781 = vmatpush1.msra.mxu0 0.0
  %782 = vmatprep.subr.mxu0 0.0
  %783 = vmatpush1.msra.mxu0 0.0
  %784 = vmatprep.subr.mxu0 0.0
  %785 = vmatpush1.msra.mxu0 0.0
  %786 = vmatprep.subr.mxu0 0.0
  %787 = vmatpush1.msra.mxu0 0.0
  %788 = vmatprep.subr.mxu0 0.0
  %789 = vmatpush1.msra.mxu0 0.0
  %790 = vmatprep.subr.mxu0 0.0
  %791 = vmatpush1.msra.mxu0 0.0
  %792 = vmatprep.subr.mxu0 0.0
  %793 = vmatpush1.msra.mxu0 0.0
  %794 = vmatprep.subr.mxu0 0.0
  %795 = vmatpush1.msra.mxu0 0.0
  %796 = vmatprep.mubr.f32.mxu0 %v393
  %797 = vmatmul.mubr.f32.gmra.mrb[0].mxu0 %v143
  %v798 = vpop.f32.mrb[0].mxu0
  %v799 = vadd.f32 %v650, %v798
  %v800 = vpop.f32.mrb[0].mxu0
  %v801 = vadd.f32 %v652, %v800
  %802 = vmatprep.mubr.f32.mxu0 %v396
  %803 = vmatmul.mubr.f32.gmra.mrb[0].mxu0 %v149
  %v804 = vpop.f32.mrb[0].mxu0
  %v805 = vadd.f32 %v656, %v804
  %v806 = vpop.f32.mrb[0].mxu0
  %v807 = vadd.f32 %v658, %v806
  %808 = vmatprep.mubr.f32.mxu0 %v399
  %809 = vmatmul.mubr.f32.gmra.mrb[0].mxu0 %v155
  %v810 = vpop.f32.mrb[0].mxu0
  %v811 = vadd.f32 %v662, %v810
  %v812 = vpop.f32.mrb[0].mxu0
  %v813 = vadd.f32 %v664, %v812
  %814 = vmatprep.mubr.f32.mxu0 %v402
  %815 = vmatmul.mubr.f32.gmra.mrb[0].mxu0 %v161
  %v816 = vpop.f32.mrb[0].mxu0
  %v817 = vadd.f32 %v668, %v816
  %v818 = vpop.f32.mrb[0].mxu0
  %v819 = vadd.f32 %v670, %v818
  %820 = vmatprep.mubr.f32.mxu0 %v405
  %821 = vmatmul.mubr.f32.gmra.mrb[0].mxu0 %v167
  %v822 = vpop.f32.mrb[0].mxu0
  %v823 = vadd.f32 %v674, %v822
  %v824 = vpop.f32.mrb[0].mxu0
  %v825 = vadd.f32 %v676, %v824
  %826 = vmatprep.mubr.f32.mxu0 %v408
  %827 = vmatmul.mubr.f32.gmra.mrb[0].mxu0 %v173
  %v828 = vpop.f32.mrb[0].mxu0
  %v829 = vadd.f32 %v680, %v828
  %v830 = vpop.f32.mrb[0].mxu0
  %v831 = vadd.f32 %v682, %v830
  %832 = vmatprep.mubr.f32.mxu0 %v411
  %833 = vmatmul.mubr.f32.gmra.mrb[0].mxu0 %v179
  %v834 = vpop.f32.mrb[0].mxu0
  %v835 = vadd.f32 %v686, %v834
  %v836 = vpop.f32.mrb[0].mxu0
  %v837 = vadd.f32 %v688, %v836
  %838 = vmatprep.mubr.f32.mxu0 %v414
  %839 = vmatmul.mubr.f32.gmra.mrb[0].mxu0 %v185
  %v840 = vpop.f32.mrb[0].mxu0
  %v841 = vadd.f32 %v692, %v840
  %v842 = vpop.f32.mrb[0].mxu0
  %v843 = vadd.f32 %v694, %v842
  %844 = vmatprep.mubr.f32.mxu0 %v417
  %845 = vmatmul.mubr.f32.gmra.mrb[0].mxu0 %v191
  %v846 = vpop.f32.mrb[0].mxu0
  %v847 = vadd.f32 %v698, %v846
  %v848 = vpop.f32.mrb[0].mxu0
  %v849 = vadd.f32 %v700, %v848
  %850 = vmatprep.mubr.f32.mxu0 %v420
  %851 = vmatmul.mubr.f32.gmra.mrb[0].mxu0 %v197
  %v852 = vpop.f32.mrb[0].mxu0
  %v853 = vadd.f32 %v704, %v852
  %v854 = vpop.f32.mrb[0].mxu0
  %v855 = vadd.f32 %v706, %v854
  %856 = vmatprep.mubr.f32.mxu0 %v423
  %857 = vmatmul.mubr.f32.gmra.mrb[0].mxu0 %v203
  %v858 = vpop.f32.mrb[0].mxu0
  %v859 = vadd.f32 %v710, %v858
  %v860 = vpop.f32.mrb[0].mxu0
  %v861 = vadd.f32 %v712, %v860
  %862 = vmatprep.mubr.f32.mxu0 %v426
  %863 = vmatmul.mubr.f32.gmra.mrb[0].mxu0 %v209
  %v864 = vpop.f32.mrb[0].mxu0
  %v865 = vadd.f32 %v716, %v864
  %v866 = vpop.f32.mrb[0].mxu0
  %v867 = vadd.f32 %v718, %v866
  %868 = vmatprep.mubr.f32.mxu0 %v429
  %869 = vmatmul.mubr.f32.gmra.mrb[0].mxu0 %v215
  %v870 = vpop.f32.mrb[0].mxu0
  %v871 = vadd.f32 %v722, %v870
  %v872 = vpop.f32.mrb[0].mxu0
  %v873 = vadd.f32 %v724, %v872
  %874 = vmatprep.mubr.f32.mxu0 %v432
  %875 = vmatmul.mubr.f32.gmra.mrb[0].mxu0 %v221
  %v876 = vpop.f32.mrb[0].mxu0
  %v877 = vadd.f32 %v728, %v876
  %v878 = vpop.f32.mrb[0].mxu0
  %v879 = vadd.f32 %v730, %v878
  %880 = vdwg.mxu0
  %v881 = vlaneseq
  %v882 = vand.u32 %v881, 127
  %v883 = vadd.s32 %v882, 128
  %vm884 = vcmp.lt.s32.totalorder %v882, 196
  %vm885 = vcmp.lt.s32.totalorder %v883, 196
  %v886 = vsel %vm884, %v799, 0.0
  %v887 = vsel %vm885, %v801, 0.0
  %v888 = vsel %vm884, %v805, 0.0
  %v889 = vsel %vm885, %v807, 0.0
  %v890 = vsel %vm884, %v811, 0.0
  %v891 = vsel %vm885, %v813, 0.0
  %v892 = vsel %vm884, %v817, 0.0
  %v893 = vsel %vm885, %v819, 0.0
  %v894 = vsel %vm884, %v823, 0.0
  %v895 = vsel %vm885, %v825, 0.0
  %v896 = vsel %vm884, %v829, 0.0
  %v897 = vsel %vm885, %v831, 0.0
  %v898 = vsel %vm884, %v835, 0.0
  %v899 = vsel %vm885, %v837, 0.0
  %v900 = vsel %vm884, %v841, 0.0
  %v901 = vsel %vm885, %v843, 0.0
  %v902 = vsel %vm884, %v847, 0.0
  %v903 = vsel %vm885, %v849, 0.0
  %v904 = vsel %vm884, %v853, 0.0
  %v905 = vsel %vm885, %v855, 0.0
  %v906 = vsel %vm884, %v859, 0.0
  %v907 = vsel %vm885, %v861, 0.0
  %v908 = vsel %vm884, %v865, 0.0
  %v909 = vsel %vm885, %v867, 0.0
  %v910 = vsel %vm884, %v871, 0.0
  %v911 = vsel %vm885, %v873, 0.0
  %v912 = vsel %vm884, %v877, 0.0
  %v913 = vsel %vm885, %v879, 0.0
  %v914 = vadd.f32 %v886, %v887
  %915 = vadd.xlane.f32.xlu0 %v914
  %v916 = vpop.xlane.xlu0 %915
  %v917 = vadd.f32 %v888, %v889
  %918 = vadd.xlane.f32.xlu0 %v917
  %v919 = vpop.xlane.xlu0 %918
  %v920 = vadd.f32 %v890, %v891
  %921 = vadd.xlane.f32.xlu0 %v920
  %v922 = vpop.xlane.xlu0 %921
  %v923 = vadd.f32 %v892, %v893
  %924 = vadd.xlane.f32.xlu0 %v923
  %v925 = vpop.xlane.xlu0 %924
  %v926 = vadd.f32 %v894, %v895
  %927 = vadd.xlane.f32.xlu0 %v926
  %v928 = vpop.xlane.xlu0 %927
  %v929 = vadd.f32 %v896, %v897
  %930 = vadd.xlane.f32.xlu0 %v929
  %v931 = vpop.xlane.xlu0 %930
  %v932 = vadd.f32 %v898, %v899
  %933 = vadd.xlane.f32.xlu0 %v932
  %v934 = vpop.xlane.xlu0 %933
  %v935 = vadd.f32 %v900, %v901
  %936 = vadd.xlane.f32.xlu0 %v935
  %v937 = vpop.xlane.xlu0 %936
  %v938 = vadd.f32 %v902, %v903
  %939 = vadd.xlane.f32.xlu0 %v938
  %v940 = vpop.xlane.xlu0 %939
  %v941 = vadd.f32 %v904, %v905
  %942 = vadd.xlane.f32.xlu0 %v941
  %v943 = vpop.xlane.xlu0 %942
  %v944 = vadd.f32 %v906, %v907
  %945 = vadd.xlane.f32.xlu0 %v944
  %v946 = vpop.xlane.xlu0 %945
  %v947 = vadd.f32 %v908, %v909
  %948 = vadd.xlane.f32.xlu0 %v947
  %v949 = vpop.xlane.xlu0 %948
  %v950 = vadd.f32 %v910, %v911
  %951 = vadd.xlane.f32.xlu0 %v950
  %v952 = vpop.xlane.xlu0 %951
  %v953 = vadd.f32 %v912, %v913
  %954 = vadd.xlane.f32.xlu0 %v953
  %v955 = vpop.xlane.xlu0 %954
  %v956 = vmul.f32 %v916, 0.0051020407
  %v957 = vmul.f32 %v919, 0.0051020407
  %v958 = vmul.f32 %v922, 0.0051020407
  %v959 = vmul.f32 %v925, 0.0051020407
  %v960 = vmul.f32 %v928, 0.0051020407
  %v961 = vmul.f32 %v931, 0.0051020407
  %v962 = vmul.f32 %v934, 0.0051020407
  %v963 = vmul.f32 %v937, 0.0051020407
  %v964 = vmul.f32 %v940, 0.0051020407
  %v965 = vmul.f32 %v943, 0.0051020407
  %v966 = vmul.f32 %v946, 0.0051020407
  %v967 = vmul.f32 %v949, 0.0051020407
  %v968 = vmul.f32 %v952, 0.0051020407
  %v969 = vmul.f32 %v955, 0.0051020407
  %v970 = vmul.f32 %v886, %v886
  %v971 = vmul.f32 %v887, %v887
  %v972 = vmul.f32 %v888, %v888
  %v973 = vmul.f32 %v889, %v889
  %v974 = vmul.f32 %v890, %v890
  %v975 = vmul.f32 %v891, %v891
  %v976 = vmul.f32 %v892, %v892
  %v977 = vmul.f32 %v893, %v893
  %v978 = vmul.f32 %v894, %v894
  %v979 = vmul.f32 %v895, %v895
  %v980 = vmul.f32 %v896, %v896
  %v981 = vmul.f32 %v897, %v897
  %v982 = vmul.f32 %v898, %v898
  %v983 = vmul.f32 %v899, %v899
  %v984 = vmul.f32 %v900, %v900
  %v985 = vmul.f32 %v901, %v901
  %v986 = vmul.f32 %v902, %v902
  %v987 = vmul.f32 %v903, %v903
  %v988 = vmul.f32 %v904, %v904
  %v989 = vmul.f32 %v905, %v905
  %v990 = vmul.f32 %v906, %v906
  %v991 = vmul.f32 %v907, %v907
  %v992 = vmul.f32 %v908, %v908
  %v993 = vmul.f32 %v909, %v909
  %v994 = vmul.f32 %v910, %v910
  %v995 = vmul.f32 %v911, %v911
  %v996 = vmul.f32 %v912, %v912
  %v997 = vmul.f32 %v913, %v913
  %v998 = vadd.f32 %v970, %v971
  %999 = vadd.xlane.f32.xlu0 %v998
  %v1000 = vpop.xlane.xlu0 %999
  %v1001 = vadd.f32 %v972, %v973
  %1002 = vadd.xlane.f32.xlu0 %v1001
  %v1003 = vpop.xlane.xlu0 %1002
  %v1004 = vadd.f32 %v974, %v975
  %1005 = vadd.xlane.f32.xlu0 %v1004
  %v1006 = vpop.xlane.xlu0 %1005
  %v1007 = vadd.f32 %v976, %v977
  %1008 = vadd.xlane.f32.xlu0 %v1007
  %v1009 = vpop.xlane.xlu0 %1008
  %v1010 = vadd.f32 %v978, %v979
  %1011 = vadd.xlane.f32.xlu0 %v1010
  %v1012 = vpop.xlane.xlu0 %1011
  %v1013 = vadd.f32 %v980, %v981
  %1014 = vadd.xlane.f32.xlu0 %v1013
  %v1015 = vpop.xlane.xlu0 %1014
  %v1016 = vadd.f32 %v982, %v983
  %1017 = vadd.xlane.f32.xlu0 %v1016
  %v1018 = vpop.xlane.xlu0 %1017
  %v1019 = vadd.f32 %v984, %v985
  %1020 = vadd.xlane.f32.xlu0 %v1019
  %v1021 = vpop.xlane.xlu0 %1020
  %v1022 = vadd.f32 %v986, %v987
  %1023 = vadd.xlane.f32.xlu0 %v1022
  %v1024 = vpop.xlane.xlu0 %1023
  %v1025 = vadd.f32 %v988, %v989
  %1026 = vadd.xlane.f32.xlu0 %v1025
  %v1027 = vpop.xlane.xlu0 %1026
  %v1028 = vadd.f32 %v990, %v991
  %1029 = vadd.xlane.f32.xlu0 %v1028
  %v1030 = vpop.xlane.xlu0 %1029
  %v1031 = vadd.f32 %v992, %v993
  %1032 = vadd.xlane.f32.xlu0 %v1031
  %v1033 = vpop.xlane.xlu0 %1032
  %v1034 = vadd.f32 %v994, %v995
  %1035 = vadd.xlane.f32.xlu0 %v1034
  %v1036 = vpop.xlane.xlu0 %1035
  %v1037 = vadd.f32 %v996, %v997
  %1038 = vadd.xlane.f32.xlu0 %v1037
  %v1039 = vpop.xlane.xlu0 %1038
  %v1040 = vmul.f32 %v1000, 0.0051020407
  %v1041 = vmul.f32 %v1003, 0.0051020407
  %v1042 = vmul.f32 %v1006, 0.0051020407
  %v1043 = vmul.f32 %v1009, 0.0051020407
  %v1044 = vmul.f32 %v1012, 0.0051020407
  %v1045 = vmul.f32 %v1015, 0.0051020407
  %v1046 = vmul.f32 %v1018, 0.0051020407
  %v1047 = vmul.f32 %v1021, 0.0051020407
  %v1048 = vmul.f32 %v1024, 0.0051020407
  %v1049 = vmul.f32 %v1027, 0.0051020407
  %v1050 = vmul.f32 %v1030, 0.0051020407
  %v1051 = vmul.f32 %v1033, 0.0051020407
  %v1052 = vmul.f32 %v1036, 0.0051020407
  %v1053 = vmul.f32 %v1039, 0.0051020407
  %v1054 = vmul.f32 %v956, %v956
  %v1055 = vmul.f32 %v957, %v957
  %v1056 = vmul.f32 %v958, %v958
  %v1057 = vmul.f32 %v959, %v959
  %v1058 = vmul.f32 %v960, %v960
  %v1059 = vmul.f32 %v961, %v961
  %v1060 = vmul.f32 %v962, %v962
  %v1061 = vmul.f32 %v963, %v963
  %v1062 = vmul.f32 %v964, %v964
  %v1063 = vmul.f32 %v965, %v965
  %v1064 = vmul.f32 %v966, %v966
  %v1065 = vmul.f32 %v967, %v967
  %v1066 = vmul.f32 %v968, %v968
  %v1067 = vmul.f32 %v969, %v969
  %v1068 = vsub.f32 %v1040, %v1054
  %v1069 = vsub.f32 %v1041, %v1055
  %v1070 = vsub.f32 %v1042, %v1056
  %v1071 = vsub.f32 %v1043, %v1057
  %v1072 = vsub.f32 %v1044, %v1058
  %v1073 = vsub.f32 %v1045, %v1059
  %v1074 = vsub.f32 %v1046, %v1060
  %v1075 = vsub.f32 %v1047, %v1061
  %v1076 = vsub.f32 %v1048, %v1062
  %v1077 = vsub.f32 %v1049, %v1063
  %v1078 = vsub.f32 %v1050, %v1064
  %v1079 = vsub.f32 %v1051, %v1065
  %v1080 = vsub.f32 %v1052, %v1066
  %v1081 = vsub.f32 %v1053, %v1067
  %v1082 = vadd.f32 %v1068, 0.001
  %v1083 = vadd.f32 %v1069, 0.001
  %v1084 = vadd.f32 %v1070, 0.001
  %v1085 = vadd.f32 %v1071, 0.001
  %v1086 = vadd.f32 %v1072, 0.001
  %v1087 = vadd.f32 %v1073, 0.001
  %v1088 = vadd.f32 %v1074, 0.001
  %v1089 = vadd.f32 %v1075, 0.001
  %v1090 = vadd.f32 %v1076, 0.001
  %v1091 = vadd.f32 %v1077, 0.001
  %v1092 = vadd.f32 %v1078, 0.001
  %v1093 = vadd.f32 %v1079, 0.001
  %v1094 = vadd.f32 %v1080, 0.001
  %v1095 = vadd.f32 %v1081, 0.001
  %v1096 = vrsqrt.pop %v1082
  %v1097 = vrsqrt.pop %v1083
  %v1098 = vrsqrt.pop %v1084
  %v1099 = vrsqrt.pop %v1085
  %v1100 = vrsqrt.pop %v1086
  %v1101 = vrsqrt.pop %v1087
  %v1102 = vrsqrt.pop %v1088
  %v1103 = vrsqrt.pop %v1089
  %v1104 = vrsqrt.pop %v1090
  %v1105 = vrsqrt.pop %v1091
  %v1106 = vrsqrt.pop %v1092
  %v1107 = vrsqrt.pop %v1093
  %v1108 = vrsqrt.pop %v1094
  %v1109 = vrsqrt.pop %v1095
  %v1110 = vld [vmem:[%s3] sm:$0xff]
  %v1111 = vld [vmem:[%s3 + $0x8] sm:$0xff]
  %v1112 = vld [vmem:[%s3 + $0x10] sm:$0xff]
  %v1113 = vld [vmem:[%s3 + $0x18] sm:$0xff]
  %v1114 = vld [vmem:[%s3 + $0x20] sm:$0xff]
  %v1115 = vld [vmem:[%s3 + $0x28] sm:$0xff]
  %v1116 = vld [vmem:[%s3 + $0x30] sm:$0xff]
  %v1117 = vld [vmem:[%s3 + $0x38] sm:$0xff]
  %v1118 = vld [vmem:[%s3 + $0x40] sm:$0xff]
  %v1119 = vld [vmem:[%s3 + $0x48] sm:$0xff]
  %v1120 = vld [vmem:[%s3 + $0x50] sm:$0xff]
  %v1121 = vld [vmem:[%s3 + $0x58] sm:$0xff]
  %v1122 = vld [vmem:[%s3 + $0x60] sm:$0xff]
  %v1123 = vld [vmem:[%s3 + $0x68] sm:$0xff]
  %v1124 = vmul.f32 %v1110, %v1096
  %v1125 = vmul.f32 %v1111, %v1097
  %v1126 = vmul.f32 %v1112, %v1098
  %v1127 = vmul.f32 %v1113, %v1099
  %v1128 = vmul.f32 %v1114, %v1100
  %v1129 = vmul.f32 %v1115, %v1101
  %v1130 = vmul.f32 %v1116, %v1102
  %v1131 = vmul.f32 %v1117, %v1103
  %v1132 = vmul.f32 %v1118, %v1104
  %v1133 = vmul.f32 %v1119, %v1105
  %v1134 = vmul.f32 %v1120, %v1106
  %v1135 = vmul.f32 %v1121, %v1107
  %v1136 = vmul.f32 %v1122, %v1108
  %v1137 = vmul.f32 %v1123, %v1109
  %v1138 = vld [vmem:[%s4] sm:$0xff]
  %v1139 = vld [vmem:[%s4 + $0x8] sm:$0xff]
  %v1140 = vld [vmem:[%s4 + $0x10] sm:$0xff]
  %v1141 = vld [vmem:[%s4 + $0x18] sm:$0xff]
  %v1142 = vld [vmem:[%s4 + $0x20] sm:$0xff]
  %v1143 = vld [vmem:[%s4 + $0x28] sm:$0xff]
  %v1144 = vld [vmem:[%s4 + $0x30] sm:$0xff]
  %v1145 = vld [vmem:[%s4 + $0x38] sm:$0xff]
  %v1146 = vld [vmem:[%s4 + $0x40] sm:$0xff]
  %v1147 = vld [vmem:[%s4 + $0x48] sm:$0xff]
  %v1148 = vld [vmem:[%s4 + $0x50] sm:$0xff]
  %v1149 = vld [vmem:[%s4 + $0x58] sm:$0xff]
  %v1150 = vld [vmem:[%s4 + $0x60] sm:$0xff]
  %v1151 = vld [vmem:[%s4 + $0x68] sm:$0xff]
  %v1152 = vmul.f32 %v956, %v1124
  %v1153 = vmul.f32 %v957, %v1125
  %v1154 = vmul.f32 %v958, %v1126
  %v1155 = vmul.f32 %v959, %v1127
  %v1156 = vmul.f32 %v960, %v1128
  %v1157 = vmul.f32 %v961, %v1129
  %v1158 = vmul.f32 %v962, %v1130
  %v1159 = vmul.f32 %v963, %v1131
  %v1160 = vmul.f32 %v964, %v1132
  %v1161 = vmul.f32 %v965, %v1133
  %v1162 = vmul.f32 %v966, %v1134
  %v1163 = vmul.f32 %v967, %v1135
  %v1164 = vmul.f32 %v968, %v1136
  %v1165 = vmul.f32 %v969, %v1137
  %v1166 = vsub.f32 %v1138, %v1152
  %v1167 = vsub.f32 %v1139, %v1153
  %v1168 = vsub.f32 %v1140, %v1154
  %v1169 = vsub.f32 %v1141, %v1155
  %v1170 = vsub.f32 %v1142, %v1156
  %v1171 = vsub.f32 %v1143, %v1157
  %v1172 = vsub.f32 %v1144, %v1158
  %v1173 = vsub.f32 %v1145, %v1159
  %v1174 = vsub.f32 %v1146, %v1160
  %v1175 = vsub.f32 %v1147, %v1161
  %v1176 = vsub.f32 %v1148, %v1162
  %v1177 = vsub.f32 %v1149, %v1163
  %v1178 = vsub.f32 %v1150, %v1164
  %v1179 = vsub.f32 %v1151, %v1165
  %1181 = vset.pattern.permute.xlu0 0
  %1182 = vperm.xlu0 %1181, %v1124
  %v1183 = vpop.permute.xlu0 %1182
  %1186 = vset.pattern.permute.xlu0 0
  %1187 = vperm.xlu0 %1186, %v1125
  %v1188 = vpop.permute.xlu0 %1187
  %1191 = vset.pattern.permute.xlu0 0
  %1192 = vperm.xlu0 %1191, %v1126
  %v1193 = vpop.permute.xlu0 %1192
  %1196 = vset.pattern.permute.xlu0 0
  %1197 = vperm.xlu0 %1196, %v1127
  %v1198 = vpop.permute.xlu0 %1197
  %1201 = vset.pattern.permute.xlu0 0
  %1202 = vperm.xlu0 %1201, %v1128
  %v1203 = vpop.permute.xlu0 %1202
  %1206 = vset.pattern.permute.xlu0 0
  %1207 = vperm.xlu0 %1206, %v1129
  %v1208 = vpop.permute.xlu0 %1207
  %1211 = vset.pattern.permute.xlu0 0
  %1212 = vperm.xlu0 %1211, %v1130
  %v1213 = vpop.permute.xlu0 %1212
  %1216 = vset.pattern.permute.xlu0 0
  %1217 = vperm.xlu0 %1216, %v1131
  %v1218 = vpop.permute.xlu0 %1217
  %1221 = vset.pattern.permute.xlu0 0
  %1222 = vperm.xlu0 %1221, %v1132
  %v1223 = vpop.permute.xlu0 %1222
  %1226 = vset.pattern.permute.xlu0 0
  %1227 = vperm.xlu0 %1226, %v1133
  %v1228 = vpop.permute.xlu0 %1227
  %1231 = vset.pattern.permute.xlu0 0
  %1232 = vperm.xlu0 %1231, %v1134
  %v1233 = vpop.permute.xlu0 %1232
  %1236 = vset.pattern.permute.xlu0 0
  %1237 = vperm.xlu0 %1236, %v1135
  %v1238 = vpop.permute.xlu0 %1237
  %1241 = vset.pattern.permute.xlu0 0
  %1242 = vperm.xlu0 %1241, %v1136
  %v1243 = vpop.permute.xlu0 %1242
  %1246 = vset.pattern.permute.xlu0 0
  %1247 = vperm.xlu0 %1246, %v1137
  %v1248 = vpop.permute.xlu0 %1247
  %v1250 = vmul.f32 %v799, %v1183
  %v1251 = vmul.f32 %v801, %v1183
  %v1252 = vmul.f32 %v805, %v1188
  %v1253 = vmul.f32 %v807, %v1188
  %v1254 = vmul.f32 %v811, %v1193
  %v1255 = vmul.f32 %v813, %v1193
  %v1256 = vmul.f32 %v817, %v1198
  %v1257 = vmul.f32 %v819, %v1198
  %v1258 = vmul.f32 %v823, %v1203
  %v1259 = vmul.f32 %v825, %v1203
  %v1260 = vmul.f32 %v829, %v1208
  %v1261 = vmul.f32 %v831, %v1208
  %v1262 = vmul.f32 %v835, %v1213
  %v1263 = vmul.f32 %v837, %v1213
  %v1264 = vmul.f32 %v841, %v1218
  %v1265 = vmul.f32 %v843, %v1218
  %v1266 = vmul.f32 %v847, %v1223
  %v1267 = vmul.f32 %v849, %v1223
  %v1268 = vmul.f32 %v853, %v1228
  %v1269 = vmul.f32 %v855, %v1228
  %v1270 = vmul.f32 %v859, %v1233
  %v1271 = vmul.f32 %v861, %v1233
  %v1272 = vmul.f32 %v865, %v1238
  %v1273 = vmul.f32 %v867, %v1238
  %v1274 = vmul.f32 %v871, %v1243
  %v1275 = vmul.f32 %v873, %v1243
  %v1276 = vmul.f32 %v877, %v1248
  %v1277 = vmul.f32 %v879, %v1248
  %1279 = vset.pattern.permute.xlu0 0
  %1280 = vperm.xlu0 %1279, %v1166
  %v1281 = vpop.permute.xlu0 %1280
  %1284 = vset.pattern.permute.xlu0 0
  %1285 = vperm.xlu0 %1284, %v1167
  %v1286 = vpop.permute.xlu0 %1285
  %1289 = vset.pattern.permute.xlu0 0
  %1290 = vperm.xlu0 %1289, %v1168
  %v1291 = vpop.permute.xlu0 %1290
  %1294 = vset.pattern.permute.xlu0 0
  %1295 = vperm.xlu0 %1294, %v1169
  %v1296 = vpop.permute.xlu0 %1295
  %1299 = vset.pattern.permute.xlu0 0
  %1300 = vperm.xlu0 %1299, %v1170
  %v1301 = vpop.permute.xlu0 %1300
  %1304 = vset.pattern.permute.xlu0 0
  %1305 = vperm.xlu0 %1304, %v1171
  %v1306 = vpop.permute.xlu0 %1305
  %1309 = vset.pattern.permute.xlu0 0
  %1310 = vperm.xlu0 %1309, %v1172
  %v1311 = vpop.permute.xlu0 %1310
  %1314 = vset.pattern.permute.xlu0 0
  %1315 = vperm.xlu0 %1314, %v1173
  %v1316 = vpop.permute.xlu0 %1315
  %1319 = vset.pattern.permute.xlu0 0
  %1320 = vperm.xlu0 %1319, %v1174
  %v1321 = vpop.permute.xlu0 %1320
  %1324 = vset.pattern.permute.xlu0 0
  %1325 = vperm.xlu0 %1324, %v1175
  %v1326 = vpop.permute.xlu0 %1325
  %1329 = vset.pattern.permute.xlu0 0
  %1330 = vperm.xlu0 %1329, %v1176
  %v1331 = vpop.permute.xlu0 %1330
  %1334 = vset.pattern.permute.xlu0 0
  %1335 = vperm.xlu0 %1334, %v1177
  %v1336 = vpop.permute.xlu0 %1335
  %1339 = vset.pattern.permute.xlu0 0
  %1340 = vperm.xlu0 %1339, %v1178
  %v1341 = vpop.permute.xlu0 %1340
  %1344 = vset.pattern.permute.xlu0 0
  %1345 = vperm.xlu0 %1344, %v1179
  %v1346 = vpop.permute.xlu0 %1345
  %v1348 = vadd.f32 %v1250, %v1281
  %v1349 = vadd.f32 %v1251, %v1281
  %v1350 = vadd.f32 %v1252, %v1286
  %v1351 = vadd.f32 %v1253, %v1286
  %v1352 = vadd.f32 %v1254, %v1291
  %v1353 = vadd.f32 %v1255, %v1291
  %v1354 = vadd.f32 %v1256, %v1296
  %v1355 = vadd.f32 %v1257, %v1296
  %v1356 = vadd.f32 %v1258, %v1301
  %v1357 = vadd.f32 %v1259, %v1301
  %v1358 = vadd.f32 %v1260, %v1306
  %v1359 = vadd.f32 %v1261, %v1306
  %v1360 = vadd.f32 %v1262, %v1311
  %v1361 = vadd.f32 %v1263, %v1311
  %v1362 = vadd.f32 %v1264, %v1316
  %v1363 = vadd.f32 %v1265, %v1316
  %v1364 = vadd.f32 %v1266, %v1321
  %v1365 = vadd.f32 %v1267, %v1321
  %v1366 = vadd.f32 %v1268, %v1326
  %v1367 = vadd.f32 %v1269, %v1326
  %v1368 = vadd.f32 %v1270, %v1331
  %v1369 = vadd.f32 %v1271, %v1331
  %v1370 = vadd.f32 %v1272, %v1336
  %v1371 = vadd.f32 %v1273, %v1336
  %v1372 = vadd.f32 %v1274, %v1341
  %v1373 = vadd.f32 %v1275, %v1341
  %v1374 = vadd.f32 %v1276, %v1346
  %v1375 = vadd.f32 %v1277, %v1346
  %v1376 = vld [vmem:[%s5] sm:$0xff]
  %v1377 = vld [vmem:[%s5 + $0x8] sm:$0xff]
  %v1378 = vld [vmem:[%s5 + $0x10] sm:$0xff]
  %v1379 = vld [vmem:[%s5 + $0x18] sm:$0xff]
  %v1380 = vld [vmem:[%s5 + $0x20] sm:$0xff]
  %v1381 = vld [vmem:[%s5 + $0x28] sm:$0xff]
  %v1382 = vld [vmem:[%s5 + $0x30] sm:$0xff]
  %v1383 = vld [vmem:[%s5 + $0x38] sm:$0xff]
  %v1384 = vld [vmem:[%s5 + $0x40] sm:$0xff]
  %v1385 = vld [vmem:[%s5 + $0x48] sm:$0xff]
  %v1386 = vld [vmem:[%s5 + $0x50] sm:$0xff]
  %v1387 = vld [vmem:[%s5 + $0x58] sm:$0xff]
  %v1388 = vld [vmem:[%s5 + $0x60] sm:$0xff]
  %v1389 = vld [vmem:[%s5 + $0x68] sm:$0xff]
  %v1390 = vld [vmem:[%s5 + $0x70] sm:$0xff]
  %v1391 = vld [vmem:[%s5 + $0x78] sm:$0xff]
  %v1392 = vld [vmem:[%s5 + $0x80] sm:$0xff]
  %v1393 = vld [vmem:[%s5 + $0x88] sm:$0xff]
  %v1394 = vld [vmem:[%s5 + $0x90] sm:$0xff]
  %v1395 = vld [vmem:[%s5 + $0x98] sm:$0xff]
  %v1396 = vld [vmem:[%s5 + $0xa0] sm:$0xff]
  %v1397 = vld [vmem:[%s5 + $0xa8] sm:$0xff]
  %v1398 = vld [vmem:[%s5 + $0xb0] sm:$0xff]
  %v1399 = vld [vmem:[%s5 + $0xb8] sm:$0xff]
  %v1400 = vld [vmem:[%s5 + $0xc0] sm:$0xff]
  %v1401 = vld [vmem:[%s5 + $0xc8] sm:$0xff]
  %v1402 = vld [vmem:[%s5 + $0xd0] sm:$0xff]
  %v1403 = vld [vmem:[%s5 + $0xd8] sm:$0xff]
  %v1404 = vadd.f32 %v1348, %v1376
  %v1405 = vadd.f32 %v1349, %v1377
  %v1406 = vadd.f32 %v1350, %v1378
  %v1407 = vadd.f32 %v1351, %v1379
  %v1408 = vadd.f32 %v1352, %v1380
  %v1409 = vadd.f32 %v1353, %v1381
  %v1410 = vadd.f32 %v1354, %v1382
  %v1411 = vadd.f32 %v1355, %v1383
  %v1412 = vadd.f32 %v1356, %v1384
  %v1413 = vadd.f32 %v1357, %v1385
  %v1414 = vadd.f32 %v1358, %v1386
  %v1415 = vadd.f32 %v1359, %v1387
  %v1416 = vadd.f32 %v1360, %v1388
  %v1417 = vadd.f32 %v1361, %v1389
  %v1418 = vadd.f32 %v1362, %v1390
  %v1419 = vadd.f32 %v1363, %v1391
  %v1420 = vadd.f32 %v1364, %v1392
  %v1421 = vadd.f32 %v1365, %v1393
  %v1422 = vadd.f32 %v1366, %v1394
  %v1423 = vadd.f32 %v1367, %v1395
  %v1424 = vadd.f32 %v1368, %v1396
  %v1425 = vadd.f32 %v1369, %v1397
  %v1426 = vadd.f32 %v1370, %v1398
  %v1427 = vadd.f32 %v1371, %v1399
  %v1428 = vadd.f32 %v1372, %v1400
  %v1429 = vadd.f32 %v1373, %v1401
  %v1430 = vadd.f32 %v1374, %v1402
  %v1431 = vadd.f32 %v1375, %v1403
  %1432 = vst [vmem:[%s6] sm:$0xff] %v1404
  %1433 = vst [vmem:[%s6 + $0x8] sm:$0xff] %v1405
  %1434 = vst [vmem:[%s6 + $0x10] sm:$0xff] %v1406
  %1435 = vst [vmem:[%s6 + $0x18] sm:$0xff] %v1407
  %1436 = vst [vmem:[%s6 + $0x20] sm:$0xff] %v1408
  %1437 = vst [vmem:[%s6 + $0x28] sm:$0xff] %v1409
  %1438 = vst [vmem:[%s6 + $0x30] sm:$0xff] %v1410
  %1439 = vst [vmem:[%s6 + $0x38] sm:$0xff] %v1411
  %1440 = vst [vmem:[%s6 + $0x40] sm:$0xff] %v1412
  %1441 = vst [vmem:[%s6 + $0x48] sm:$0xff] %v1413
  %1442 = vst [vmem:[%s6 + $0x50] sm:$0xff] %v1414
  %1443 = vst [vmem:[%s6 + $0x58] sm:$0xff] %v1415
  %1444 = vst [vmem:[%s6 + $0x60] sm:$0xff] %v1416
  %1445 = vst [vmem:[%s6 + $0x68] sm:$0xff] %v1417
  %1446 = vst [vmem:[%s6 + $0x70] sm:$0xff] %v1418
  %1447 = vst [vmem:[%s6 + $0x78] sm:$0xff] %v1419
  %1448 = vst [vmem:[%s6 + $0x80] sm:$0xff] %v1420
  %1449 = vst [vmem:[%s6 + $0x88] sm:$0xff] %v1421
  %1450 = vst [vmem:[%s6 + $0x90] sm:$0xff] %v1422
  %1451 = vst [vmem:[%s6 + $0x98] sm:$0xff] %v1423
  %1452 = vst [vmem:[%s6 + $0xa0] sm:$0xff] %v1424
  %1453 = vst [vmem:[%s6 + $0xa8] sm:$0xff] %v1425
  %1454 = vst [vmem:[%s6 + $0xb0] sm:$0xff] %v1426
  %1455 = vst [vmem:[%s6 + $0xb8] sm:$0xff] %v1427
  %1456 = vst [vmem:[%s6 + $0xc0] sm:$0xff] %v1428
  %1457 = vst [vmem:[%s6 + $0xc8] sm:$0xff] %v1429
  %1458 = vst [vmem:[%s6 + $0xd0] sm:$0xff] %v1430
  %1459 = vst [vmem:[%s6 + $0xd8] sm:$0xff] %v1431
  // Predicated region
  $region26: #{tpu_custom_call.1} parent=0 // pred_check
    _
  $region27: #{tpu_custom_call.1} parent=0 // pred_check_branch
    %1461 = sbr.rel (0) target = $region29
  $region28: #{tpu_custom_call.1} parent=0 // pred_region
    _
  $region29: #{tpu_custom_call.1} parent=0 // pred_fallthru
    _
  // Predicated region
  $region30: #{tpu_custom_call.1} parent=0 // pred_check
    _
  $region31: #{tpu_custom_call.1} parent=0 // pred_check_branch
    %1463 = sbr.rel (0) target = $region33
  $region32: #{tpu_custom_call.1} parent=0 // pred_region
    _
  $region33: #{tpu_custom_call.1} parent=0 // pred_fallthru
    _

</llo_original>
